<compile_context>
chip_gen: v7x
topology: tpu7x:2x2x1
jax: 0.10.0
libtpu: 0.0.40
codegen_flags: <defaults>
</compile_context>

<pallas_src>
import jax
import jax.numpy as jnp
import numpy as np
from jax.experimental import pallas as pl
from jax.experimental.pallas import tpu as pltpu


LANE = 128        # lane width; channel tiles are this wide
ROW_CHUNK = 64    # output rows per register-resident accumulator (8 sublane tiles)


def _round_up(x, m):
    return (x + m - 1) // m * m


# ------------------------------- Pallas kernel --------------------------------

def make_crpe_kernel(H, W, K, kw_list, ct_tile, margin, bot, HW_pad, n_chunks):
    p = K // 2

    def kernel(kwcls_ref, w_ref, b_ref, q_ref, v_ref, o_ref, vpad_ref):
        ct_idx = pl.program_id(1)

        # Zero the scratch margins EVERY step: cheap, and makes the kernel
        # order-independent (required for "parallel" semantics / v7x 2 TCs).
        vpad_ref[0:margin, :] = jnp.zeros((margin, ct_tile), jnp.float32)
        vpad_ref[margin + HW_pad:margin + HW_pad + bot, :] = jnp.zeros(
            (bot, ct_tile), jnp.float32)

        # Zero-extended flattened image.  v rows [8, 8+HW_pad) are the image
        # followed by wrapper zero-padding, so rows past H*W stay zero.
        # TODO(synk): on v6e/v7x with bf16 inputs keep scratch/tap math in bf16;
        # f32 kept here for exact parity with the f32 reference and v5e safety.
        vpad_ref[margin:margin + HW_pad, :] = v_ref[0, 8:8 + HW_pad, :].astype(
            jnp.float32)

        # Leading 8 rows of the output (CLS token lives at row 7) are zero
        # (this is the F.pad in the reference module) — one aligned store.
        o_ref[0, 0:8, :] = jnp.zeros((8, ct_tile), o_ref.dtype)

        # Hoist the small operands once per grid step (outside all loops).
        w_all = w_ref[...].astype(jnp.float32)   # (K*K, ct_tile)
        bias = b_ref[...].astype(jnp.float32)    # (1, ct_tile)

        def emit_conv(kw):
            off_tap = (K - kw) // 2  # smaller windows are centered in the KxK grid

            def chunk_body(ci, carry):
                start = pl.multiple_of(ci * ROW_CHUNK, ROW_CHUNK)
                # x coordinate of each output row within its image row; used to
                # mask taps that would cross the left/right image border.
                xpos = (start + jax.lax.broadcasted_iota(
                    jnp.int32, (ROW_CHUNK, ct_tile), 0)) % W
                acc = None
                for ddx in range(kw):
                    dx = off_tap + ddx
                    d = dx - p
                    part = None
                    for ddy in range(kw):
                        dy = off_tap + ddy
                        s = (dy - p) * W + d
                        sv = vpad_ref[pl.ds(margin + s + start, ROW_CHUNK), :]
                        term = sv * w_all[dy * K + dx, :]
                        part = term if part is None else part + term
                    if d != 0:
                        xs = xpos + d
                        part = jnp.where((xs >= 0) & (xs < W), part, 0.0)
                    acc = part if acc is None else acc + part
                row0 = pl.multiple_of(start + 8, 8)
                q_blk = q_ref[0, pl.ds(row0, ROW_CHUNK), :].astype(jnp.float32)
                o_ref[0, pl.ds(row0, ROW_CHUNK), :] = (
                    q_blk * (acc + bias)).astype(o_ref.dtype)
                return carry

            jax.lax.fori_loop(0, n_chunks, chunk_body, 0)

        # One specialized branch per window size; tiles are homogeneous in kw
        # (channels grouped by window in pack_crpe_params), so every lane runs
        # exactly kw*kw taps.
        for kw in kw_list:
            @pl.when(kwcls_ref[ct_idx] == kw)
            def _(kw=kw):
                emit_conv(kw)

    return kernel


# ---------------------------------- wrapper -----------------------------------

def conv_rel_pos_enc(q, v, size, params):
    """q, v: (B, num_heads, N, C), N = 1 + H*W. Returns (B, num_heads, N, C)."""
    B, nh, N, C = q.shape
    H, W = size
    assert N == 1 + H * W, "size mismatch"
    HW = H * W
    CT = nh * C

    K = params["K"]
    ct_tile = params["ct_tile"]
    CT_pad = params["ct_pad"]
    kw_list = params["kw_list"]
    groups = params["groups"]          # (kw, src_lo, ch, dst_lo, grp_width)
    packed_w = params["packed_w"]      # (K*K, CT_pad)
    packed_b = params["packed_b"]      # (1, CT_pad)
    kw_class = params["kw_class"]      # (CT_pad // ct_tile,) int32

    p = K // 2
    margin = _round_up(p * W + p, 8)   # top scratch margin (covers most-negative tap)
    bot = margin                        # bottom scratch margin
    HW_pad = _round_up(HW, ROW_CHUNK)
    n_chunks = HW_pad // ROW_CHUNK
    NP = 8 + HW_pad                     # folded row count (8 alignment rows + image)
    n_ct = CT_pad // ct_tile

    # Fold heads into channels (channel = head*C + c), regroup channels by
    # window size (each group padded to a lane-tile multiple), and pad rows:
    # 7 leading rows (CLS at row 7, image starts at row 8, sublane aligned)
    # plus trailing rows so the image length is a ROW_CHUNK multiple.
    def fold(x):
        xf = x.transpose(0, 2, 1, 3).reshape(B, N, CT)
        parts = []
        for (_kw, src_lo, ch, _dst_lo, grp) in groups:
            seg = xf[:, :, src_lo:src_lo + ch]
            if grp != ch:
                seg = jnp.pad(seg, ((0, 0), (0, 0), (0, grp - ch)))
            parts.append(seg)
        xg = parts[0] if len(parts) == 1 else jnp.concatenate(parts, axis=-1)
        return jnp.pad(xg, ((0, 0), (7, HW_pad - HW), (0, 0)))

    q_f = fold(q)
    v_f = fold(v)

    kernel = make_crpe_kernel(H, W, K, kw_list, ct_tile, margin, bot, HW_pad, n_chunks)

    out_f = pl.pallas_call(
        kernel,
        out_shape=jax.ShapeDtypeStruct((B, NP, CT_pad), q.dtype),
        grid_spec=pltpu.PrefetchScalarGridSpec(
            num_scalar_prefetch=1,
            grid=(B, n_ct),
            in_specs=[
                pl.BlockSpec((K * K, ct_tile), lambda b, c, kwcls: (0, c)),
                pl.BlockSpec((1, ct_tile), lambda b, c, kwcls: (0, c)),
                pl.BlockSpec((1, NP, ct_tile), lambda b, c, kwcls: (b, 0, c)),
                pl.BlockSpec((1, NP, ct_tile), lambda b, c, kwcls: (b, 0, c)),
            ],
            out_specs=pl.BlockSpec((1, NP, ct_tile), lambda b, c, kwcls: (b, 0, c)),
            scratch_shapes=[pltpu.VMEM((margin + HW_pad + bot, ct_tile), jnp.float32)],
        ),
        compiler_params=pltpu.CompilerParams(
            dimension_semantics=("parallel", "parallel"),
            vmem_limit_bytes=32 * 1024 * 1024,
        ),
    )(kw_class, packed_w, packed_b, q_f, v_f)

    # Unfold: drop alignment/padding rows, de-group channels, split heads out.
    out_img = out_f[:, 7:7 + N, :]
    parts = [out_img[:, :, dst_lo:dst_lo + ch]
             for (_kw, _src_lo, ch, dst_lo, _grp) in groups]
    ev = parts[0] if len(parts) == 1 else jnp.concatenate(parts, axis=-1)
    return ev.reshape(B, N, nh, C).transpose(0, 2, 1, 3)


# -------------------- deterministic parameter construction --------------------

def init_params(window, head_channels, key):
    windows, splits, weights, biases = [], [], [], []
    for kw, hs in window.items():
        ch = hs * head_channels
        key, k1, k2 = jax.random.split(key, 3)
        # PyTorch depthwise Conv2d weight shape: (ch, 1, kw, kw); bias: (ch,)
        weights.append(jax.random.normal(k1, (ch, 1, kw, kw), jnp.float32) * 0.1)
        biases.append(jax.random.normal(k2, (ch,), jnp.float32) * 0.1)
        windows.append(kw)
        splits.append(hs)
    return windows, splits, weights, biases


def pack_crpe_params(window, head_channels, weights, biases, ct_tile=LANE):
    windows = list(window.keys())
    splits = list(window.values())
    K = max(windows)

    # Group channels by window size; pad each group to a lane-tile multiple so
    # every 128-lane tile is homogeneous in kw.
    groups = []    # (kw, src_lo, ch, dst_lo, grp_width)
    src_off, dst_off = 0, 0
    for kw, hs in zip(windows, splits):
        ch = hs * head_channels
        grp = _round_up(ch, ct_tile)
        groups.append((kw, src_off, ch, dst_off, grp))
        src_off += ch
        dst_off += grp
    CT_pad = dst_off
    n_ct = CT_pad // ct_tile

    w3 = np.zeros((K, K, CT_pad), np.float32)
    b1 = np.zeros((CT_pad,), np.float32)
    kw_class = np.zeros((n_ct,), np.int32)
    for (kw, _src_lo, ch, dst_lo, grp), w, b in zip(groups, weights, biases):
        o = (K - kw) // 2  # center smaller windows inside the K x K tap grid
        w3[o:o + kw, o:o + kw, dst_lo:dst_lo + ch] = np.transpose(
            np.asarray(w)[:, 0], (1, 2, 0))
        b1[dst_lo:dst_lo + ch] = np.asarray(b)
        kw_class[dst_lo // ct_tile:(dst_lo + grp) // ct_tile] = kw

    kw_set = sorted(set(windows))
    assert set(int(k) for k in kw_class) <= set(kw_set), "kw_class packing bug"

    return {
        "K": K,
        "kw_list": kw_set,
        "ct_pad": CT_pad,
        "ct_tile": ct_tile,
        "groups": groups,
        "packed_w": jnp.asarray(w3.reshape(K * K, CT_pad)),
        "packed_b": jnp.asarray(b1.reshape(1, CT_pad)),
        "kw_class": jnp.asarray(kw_class),
    }


# ------------------------------ pure-JAX reference -----------------------------

def ref_forward(q, v, size, windows, splits, weights, biases, head_channels):
    B, nh, N, C = q.shape
    H, W = size
    q_img = q[:, :, 1:, :]
    v_img = v[:, :, 1:, :]
    v_img = jnp.transpose(v_img, (0, 1, 3, 2)).reshape(B, nh * C, H, W)
    outs, off = [], 0
    for kw, hs, w, b in zip(windows, splits, weights, biases):
        ch = hs * head_channels
        x = v_img[:, off:off + ch]
        y = jax.lax.conv_general_dilated(
            x, w, window_strides=(1, 1), padding=[(kw // 2, kw // 2)] * 2,
            feature_group_count=ch, dimension_numbers=("NCHW", "OIHW", "NCHW"))
        outs.append(y + b[None, :, None, None])
        off += ch
    conv_v = jnp.concatenate(outs, axis=1).reshape(B, nh, C, H * W).transpose(0, 1, 3, 2)
    ev = q_img * conv_v
    return jnp.pad(ev, ((0, 0), (0, 0), (1, 0), (0, 0)))


if __name__ == "__main__":
    B, num_heads, head_channels = 2, 3, 8
    H = W = 8
    N = 1 + H * W
    window = {3: 1, 5: 2}           # window_size -> head split (sums to num_heads)

    key = jax.random.PRNGKey(0)
    key, kq, kv, kp = jax.random.split(key, 4)
    q = jax.random.normal(kq, (B, num_heads, N, head_channels), jnp.float32)
    v = jax.random.normal(kv, (B, num_heads, N, head_channels), jnp.float32)

    windows, splits, weights, biases = init_params(window, head_channels, kp)
    params = pack_crpe_params(window, head_channels, weights, biases)

    out = conv_rel_pos_enc(q, v, (H, W), params)
    out = jax.block_until_ready(out)

    ref = ref_forward(q, v, (H, W), windows, splits, weights, biases, head_channels)
    np.testing.assert_allclose(np.asarray(out), np.asarray(ref), rtol=1e-5, atol=1e-5)

    print("KERNEL_OK")
</pallas_src>

<mosaic_0001>
module attributes {stable_mosaic.version = 11 : i64} {
  func.func @kernel(%arg0: i32, %arg1: i32, %arg2: memref<2xi32, #tpu.memory_space<smem>>, %arg3: memref<25x128xf32, #tpu.memory_space<vmem>>, %arg4: memref<1x128xf32, #tpu.memory_space<vmem>>, %arg5: memref<1x72x128xf32, #tpu.memory_space<vmem>>, %arg6: memref<1x72x128xf32, #tpu.memory_space<vmem>>, %arg7: memref<1x72x128xf32, #tpu.memory_space<vmem>>, %arg8: memref<112x128xf32, #tpu.memory_space<vmem>>) attributes {dimension_semantics = [#tpu.dimension_semantics<parallel>, #tpu.dimension_semantics<parallel>], iteration_bounds = array<i64: 2, 2>, scalar_prefetch = 1 : i64, scratch_operands = 1 : i64, tpu.core_type = #tpu.core_type<tc>, window_params = [{transform_indices = @transform_0, window_bounds = array<i64: 25, 128>}, {transform_indices = @transform_1, window_bounds = array<i64: 1, 128>}, {transform_indices = @transform_2, window_bounds = array<i64: 1, 72, 128>}, {transform_indices = @transform_3, window_bounds = array<i64: 1, 72, 128>}, {transform_indices = @transform_4, window_bounds = array<i64: 1, 72, 128>}]} {
    %cst = arith.constant 0.000000e+00 : f32
    %0 = vector.broadcast %cst : f32 to vector<24x128xf32>
    %c0 = arith.constant 0 : index
    %c0_0 = arith.constant 0 : index
    %1 = vector.load %arg8[%c0, %c0_0] : memref<112x128xf32, #tpu.memory_space<vmem>>, vector<24x128xf32>
    tpu.vector_store %arg8[%c0, %c0_0], %0 {strides = array<i32>} : memref<112x128xf32, #tpu.memory_space<vmem>>, vector<24x128xf32>,
    %cst_1 = arith.constant 0.000000e+00 : f32
    %2 = vector.broadcast %cst_1 : f32 to vector<24x128xf32>
    %c88 = arith.constant 88 : index
    %c0_2 = arith.constant 0 : index
    %3 = vector.load %arg8[%c88, %c0_2] : memref<112x128xf32, #tpu.memory_space<vmem>>, vector<24x128xf32>
    tpu.vector_store %arg8[%c88, %c0_2], %2 {strides = array<i32>} : memref<112x128xf32, #tpu.memory_space<vmem>>, vector<24x128xf32>,
    %c0_3 = arith.constant 0 : index
    %c8 = arith.constant 8 : index
    %c0_4 = arith.constant 0 : index
    %4 = vector.load %arg6[%c0_3, %c8, %c0_4] : memref<1x72x128xf32, #tpu.memory_space<vmem>>, vector<1x64x128xf32>
    %5 = vector.shape_cast %4 : vector<1x64x128xf32> to vector<64x128xf32>
    %c24 = arith.constant 24 : index
    %c0_5 = arith.constant 0 : index
    %6 = vector.load %arg8[%c24, %c0_5] : memref<112x128xf32, #tpu.memory_space<vmem>>, vector<64x128xf32>
    tpu.vector_store %arg8[%c24, %c0_5], %5 {strides = array<i32>} : memref<112x128xf32, #tpu.memory_space<vmem>>, vector<64x128xf32>,
    %cst_6 = arith.constant 0.000000e+00 : f32
    %7 = vector.broadcast %cst_6 : f32 to vector<8x128xf32>
    %c0_7 = arith.constant 0 : index
    %c0_8 = arith.constant 0 : index
    %c0_9 = arith.constant 0 : index
    %8 = vector.load %arg7[%c0_7, %c0_8, %c0_9] : memref<1x72x128xf32, #tpu.memory_space<vmem>>, vector<1x8x128xf32>
    %9 = vector.shape_cast %8 : vector<1x8x128xf32> to vector<8x128xf32>
    %10 = vector.shape_cast %7 : vector<8x128xf32> to vector<1x8x128xf32>
    tpu.vector_store %arg7[%c0_7, %c0_8, %c0_9], %10 {strides = array<i32>} : memref<1x72x128xf32, #tpu.memory_space<vmem>>, vector<1x8x128xf32>,
    %c0_10 = arith.constant 0 : index
    %c0_11 = arith.constant 0 : index
    %11 = vector.load %arg3[%c0_10, %c0_11] : memref<25x128xf32, #tpu.memory_space<vmem>>, vector<25x128xf32>
    %c0_12 = arith.constant 0 : index
    %c0_13 = arith.constant 0 : index
    %12 = vector.load %arg4[%c0_12, %c0_13] : memref<1x128xf32, #tpu.memory_space<vmem>>, vector<1x128xf32>
    %13 = arith.index_cast %arg1 : i32 to index
    %14 = memref.load %arg2[%13] : memref<2xi32, #tpu.memory_space<smem>>
    %c3_i32 = arith.constant 3 : i32
    %15 = arith.cmpi eq, %14, %c3_i32 : i32
    %16 = arith.extui %15 : i1 to i32
    %c0_i32 = arith.constant 0 : i32
    %17 = arith.cmpi ne, %16, %c0_i32 : i32
    scf.if %17 {
      %c0_i32_15 = arith.constant 0 : i32
      %c64_i32 = arith.constant 64 : i32
      %23 = arith.muli %c0_i32_15, %c64_i32 : i32
      %24 = tpu.assume_multiple %23, 64 : i32
      %25 = tpu.iota {dimensions = array<i32: 0>} : vector<64x128xi32>
      %26 = vector.broadcast %24 : i32 to vector<64x128xi32>
      %27 = arith.addi %26, %25 : vector<64x128xi32>
      %c8_i32 = arith.constant 8 : i32
      %c0_i32_16 = arith.constant 0 : i32
      %28 = arith.cmpi eq, %c8_i32, %c0_i32_16 : i32
      %c1_i32 = arith.constant 1 : i32
      %29 = arith.select %28, %c1_i32, %c8_i32 : i32
      %30 = vector.broadcast %29 : i32 to vector<64x128xi32>
      %31 = arith.remsi %27, %30 : vector<64x128xi32>
      %c0_i32_17 = arith.constant 0 : i32
      %32 = vector.broadcast %c0_i32_17 : i32 to vector<64x128xi32>
      %33 = arith.cmpi ne, %31, %32 : vector<64x128xi32>
      %c0_i32_18 = arith.constant 0 : i32
      %34 = vector.broadcast %c0_i32_18 : i32 to vector<64x128xi32>
      %35 = arith.cmpi slt, %31, %34 : vector<64x128xi32>
      %c0_i32_19 = arith.constant 0 : i32
      %36 = arith.cmpi slt, %29, %c0_i32_19 : i32
      %37 = vector.broadcast %36 : i1 to vector<64x128xi1>
      %38 = vector.broadcast %37 : vector<64x128xi1> to vector<64x128xi1>
      %39 = arith.xori %35, %38 : vector<64x128xi1>
      %40 = arith.andi %39, %33 : vector<64x128xi1>
      %41 = vector.broadcast %29 : i32 to vector<64x128xi32>
      %42 = arith.addi %31, %41 : vector<64x128xi32>
      %43 = arith.select %40, %42, %31 : vector<64x128xi1>, vector<64x128xi32>
      %c15_i32 = arith.constant 15 : i32
      %44 = arith.addi %c15_i32, %24 : i32
      %45 = arith.index_cast %44 : i32 to index
      %c0_20 = arith.constant 0 : index
      %46 = vector.load %arg8[%45, %c0_20] : memref<112x128xf32, #tpu.memory_space<vmem>>, vector<64x128xf32>
      %47 = vector.extract_strided_slice %11 {offsets = [6, 0], sizes = [1, 128], strides = [1, 1]} : vector<25x128xf32> to vector<1x128xf32>
      %48 = vector.shape_cast %47 : vector<1x128xf32> to vector<128xf32>
      %49 = vector.shape_cast %48 : vector<128xf32> to vector<1x128xf32>
      %50 = vector.broadcast %49 : vector<1x128xf32> to vector<64x128xf32>
      %51 = arith.mulf %46, %50 : vector<64x128xf32>
      %c23_i32 = arith.constant 23 : i32
      %52 = arith.addi %c23_i32, %24 : i32
      %53 = arith.index_cast %52 : i32 to index
      %c0_21 = arith.constant 0 : index
      %54 = vector.load %arg8[%53, %c0_21] : memref<112x128xf32, #tpu.memory_space<vmem>>, vector<64x128xf32>
      %55 = vector.extract_strided_slice %11 {offsets = [11, 0], sizes = [1, 128], strides = [1, 1]} : vector<25x128xf32> to vector<1x128xf32>
      %56 = vector.shape_cast %55 : vector<1x128xf32> to vector<128xf32>
      %57 = vector.shape_cast %56 : vector<128xf32> to vector<1x128xf32>
      %58 = vector.broadcast %57 : vector<1x128xf32> to vector<64x128xf32>
      %59 = arith.mulf %54, %58 : vector<64x128xf32>
      %60 = arith.addf %51, %59 : vector<64x128xf32>
      %c31_i32 = arith.constant 31 : i32
      %61 = arith.addi %c31_i32, %24 : i32
      %62 = arith.index_cast %61 : i32 to index
      %c0_22 = arith.constant 0 : index
      %63 = vector.load %arg8[%62, %c0_22] : memref<112x128xf32, #tpu.memory_space<vmem>>, vector<64x128xf32>
      %64 = vector.extract_strided_slice %11 {offsets = [16, 0], sizes = [1, 128], strides = [1, 1]} : vector<25x128xf32> to vector<1x128xf32>
      %65 = vector.shape_cast %64 : vector<1x128xf32> to vector<128xf32>
      %66 = vector.shape_cast %65 : vector<128xf32> to vector<1x128xf32>
      %67 = vector.broadcast %66 : vector<1x128xf32> to vector<64x128xf32>
      %68 = arith.mulf %63, %67 : vector<64x128xf32>
      %69 = arith.addf %60, %68 : vector<64x128xf32>
      %c-1_i32 = arith.constant -1 : i32
      %70 = vector.broadcast %c-1_i32 : i32 to vector<64x128xi32>
      %71 = arith.addi %43, %70 : vector<64x128xi32>
      %c0_i32_23 = arith.constant 0 : i32
      %72 = vector.broadcast %c0_i32_23 : i32 to vector<64x128xi32>
      %73 = arith.cmpi sge, %71, %72 : vector<64x128xi32>
      %c8_i32_24 = arith.constant 8 : i32
      %74 = vector.broadcast %c8_i32_24 : i32 to vector<64x128xi32>
      %75 = arith.cmpi slt, %71, %74 : vector<64x128xi32>
      %76 = arith.andi %73, %75 : vector<64x128xi1>
      %cst_25 = arith.constant 0.000000e+00 : f32
      %77 = vector.broadcast %cst_25 : f32 to vector<64x128xf32>
      %78 = arith.select %76, %69, %77 : vector<64x128xi1>, vector<64x128xf32>
      %c16_i32 = arith.constant 16 : i32
      %79 = arith.addi %c16_i32, %24 : i32
      %80 = arith.index_cast %79 : i32 to index
      %c0_26 = arith.constant 0 : index
      %81 = vector.load %arg8[%80, %c0_26] : memref<112x128xf32, #tpu.memory_space<vmem>>, vector<64x128xf32>
      %82 = vector.extract_strided_slice %11 {offsets = [7, 0], sizes = [1, 128], strides = [1, 1]} : vector<25x128xf32> to vector<1x128xf32>
      %83 = vector.shape_cast %82 : vector<1x128xf32> to vector<128xf32>
      %84 = vector.shape_cast %83 : vector<128xf32> to vector<1x128xf32>
      %85 = vector.broadcast %84 : vector<1x128xf32> to vector<64x128xf32>
      %86 = arith.mulf %81, %85 : vector<64x128xf32>
      %c24_i32 = arith.constant 24 : i32
      %87 = arith.addi %c24_i32, %24 : i32
      %88 = arith.index_cast %87 : i32 to index
      %c0_27 = arith.constant 0 : index
      %89 = vector.load %arg8[%88, %c0_27] : memref<112x128xf32, #tpu.memory_space<vmem>>, vector<64x128xf32>
      %90 = vector.extract_strided_slice %11 {offsets = [12, 0], sizes = [1, 128], strides = [1, 1]} : vector<25x128xf32> to vector<1x128xf32>
      %91 = vector.shape_cast %90 : vector<1x128xf32> to vector<128xf32>
      %92 = vector.shape_cast %91 : vector<128xf32> to vector<1x128xf32>
      %93 = vector.broadcast %92 : vector<1x128xf32> to vector<64x128xf32>
      %94 = arith.mulf %89, %93 : vector<64x128xf32>
      %95 = arith.addf %86, %94 : vector<64x128xf32>
      %c32_i32 = arith.constant 32 : i32
      %96 = arith.addi %c32_i32, %24 : i32
      %97 = arith.index_cast %96 : i32 to index
      %c0_28 = arith.constant 0 : index
      %98 = vector.load %arg8[%97, %c0_28] : memref<112x128xf32, #tpu.memory_space<vmem>>, vector<64x128xf32>
      %99 = vector.extract_strided_slice %11 {offsets = [17, 0], sizes = [1, 128], strides = [1, 1]} : vector<25x128xf32> to vector<1x128xf32>
      %100 = vector.shape_cast %99 : vector<1x128xf32> to vector<128xf32>
      %101 = vector.shape_cast %100 : vector<128xf32> to vector<1x128xf32>
      %102 = vector.broadcast %101 : vector<1x128xf32> to vector<64x128xf32>
      %103 = arith.mulf %98, %102 : vector<64x128xf32>
      %104 = arith.addf %95, %103 : vector<64x128xf32>
      %105 = arith.addf %78, %104 : vector<64x128xf32>
      %c17_i32 = arith.constant 17 : i32
      %106 = arith.addi %c17_i32, %24 : i32
      %107 = arith.index_cast %106 : i32 to index
      %c0_29 = arith.constant 0 : index
      %108 = vector.load %arg8[%107, %c0_29] : memref<112x128xf32, #tpu.memory_space<vmem>>, vector<64x128xf32>
      %109 = vector.extract_strided_slice %11 {offsets = [8, 0], sizes = [1, 128], strides = [1, 1]} : vector<25x128xf32> to vector<1x128xf32>
      %110 = vector.shape_cast %109 : vector<1x128xf32> to vector<128xf32>
      %111 = vector.shape_cast %110 : vector<128xf32> to vector<1x128xf32>
      %112 = vector.broadcast %111 : vector<1x128xf32> to vector<64x128xf32>
      %113 = arith.mulf %108, %112 : vector<64x128xf32>
      %c25_i32 = arith.constant 25 : i32
      %114 = arith.addi %c25_i32, %24 : i32
      %115 = arith.index_cast %114 : i32 to index
      %c0_30 = arith.constant 0 : index
      %116 = vector.load %arg8[%115, %c0_30] : memref<112x128xf32, #tpu.memory_space<vmem>>, vector<64x128xf32>
      %117 = vector.extract_strided_slice %11 {offsets = [13, 0], sizes = [1, 128], strides = [1, 1]} : vector<25x128xf32> to vector<1x128xf32>
      %118 = vector.shape_cast %117 : vector<1x128xf32> to vector<128xf32>
      %119 = vector.shape_cast %118 : vector<128xf32> to vector<1x128xf32>
      %120 = vector.broadcast %119 : vector<1x128xf32> to vector<64x128xf32>
      %121 = arith.mulf %116, %120 : vector<64x128xf32>
      %122 = arith.addf %113, %121 : vector<64x128xf32>
      %c33_i32 = arith.constant 33 : i32
      %123 = arith.addi %c33_i32, %24 : i32
      %124 = arith.index_cast %123 : i32 to index
      %c0_31 = arith.constant 0 : index
      %125 = vector.load %arg8[%124, %c0_31] : memref<112x128xf32, #tpu.memory_space<vmem>>, vector<64x128xf32>
      %126 = vector.extract_strided_slice %11 {offsets = [18, 0], sizes = [1, 128], strides = [1, 1]} : vector<25x128xf32> to vector<1x128xf32>
      %127 = vector.shape_cast %126 : vector<1x128xf32> to vector<128xf32>
      %128 = vector.shape_cast %127 : vector<128xf32> to vector<1x128xf32>
      %129 = vector.broadcast %128 : vector<1x128xf32> to vector<64x128xf32>
      %130 = arith.mulf %125, %129 : vector<64x128xf32>
      %131 = arith.addf %122, %130 : vector<64x128xf32>
      %c1_i32_32 = arith.constant 1 : i32
      %132 = vector.broadcast %c1_i32_32 : i32 to vector<64x128xi32>
      %133 = arith.addi %43, %132 : vector<64x128xi32>
      %c0_i32_33 = arith.constant 0 : i32
      %134 = vector.broadcast %c0_i32_33 : i32 to vector<64x128xi32>
      %135 = arith.cmpi sge, %133, %134 : vector<64x128xi32>
      %c8_i32_34 = arith.constant 8 : i32
      %136 = vector.broadcast %c8_i32_34 : i32 to vector<64x128xi32>
      %137 = arith.cmpi slt, %133, %136 : vector<64x128xi32>
      %138 = arith.andi %135, %137 : vector<64x128xi1>
      %cst_35 = arith.constant 0.000000e+00 : f32
      %139 = vector.broadcast %cst_35 : f32 to vector<64x128xf32>
      %140 = arith.select %138, %131, %139 : vector<64x128xi1>, vector<64x128xf32>
      %141 = arith.addf %105, %140 : vector<64x128xf32>
      %c8_i32_36 = arith.constant 8 : i32
      %142 = arith.addi %24, %c8_i32_36 : i32
      %143 = tpu.assume_multiple %142, 8 : i32
      %c0_37 = arith.constant 0 : index
      %144 = arith.index_cast %143 : i32 to index
      %c0_38 = arith.constant 0 : index
      %145 = vector.load %arg5[%c0_37, %144, %c0_38] : memref<1x72x128xf32, #tpu.memory_space<vmem>>, vector<1x64x128xf32>
      %146 = vector.shape_cast %145 : vector<1x64x128xf32> to vector<64x128xf32>
      %147 = vector.broadcast %12 : vector<1x128xf32> to vector<64x128xf32>
      %148 = arith.addf %141, %147 : vector<64x128xf32>
      %149 = arith.mulf %146, %148 : vector<64x128xf32>
      %c0_39 = arith.constant 0 : index
      %150 = arith.index_cast %143 : i32 to index
      %c0_40 = arith.constant 0 : index
      %151 = vector.load %arg7[%c0_39, %150, %c0_40] : memref<1x72x128xf32, #tpu.memory_space<vmem>>, vector<1x64x128xf32>
      %152 = vector.shape_cast %151 : vector<1x64x128xf32> to vector<64x128xf32>
      %153 = vector.shape_cast %149 : vector<64x128xf32> to vector<1x64x128xf32>
      tpu.vector_store %arg7[%c0_39, %150, %c0_40], %153 {strides = array<i32>} : memref<1x72x128xf32, #tpu.memory_space<vmem>>, vector<1x64x128xf32>,
      %c1_i32_41 = arith.constant 1 : i32
    } else {
    }
    %18 = arith.index_cast %arg1 : i32 to index
    %19 = memref.load %arg2[%18] : memref<2xi32, #tpu.memory_space<smem>>
    %c5_i32 = arith.constant 5 : i32
    %20 = arith.cmpi eq, %19, %c5_i32 : i32
    %21 = arith.extui %20 : i1 to i32
    %c0_i32_14 = arith.constant 0 : i32
    %22 = arith.cmpi ne, %21, %c0_i32_14 : i32
    scf.if %22 {
      %c0_i32_15 = arith.constant 0 : i32
      %c64_i32 = arith.constant 64 : i32
      %23 = arith.muli %c0_i32_15, %c64_i32 : i32
      %24 = tpu.assume_multiple %23, 64 : i32
      %25 = tpu.iota {dimensions = array<i32: 0>} : vector<64x128xi32>
      %26 = vector.broadcast %24 : i32 to vector<64x128xi32>
      %27 = arith.addi %26, %25 : vector<64x128xi32>
      %c8_i32 = arith.constant 8 : i32
      %c0_i32_16 = arith.constant 0 : i32
      %28 = arith.cmpi eq, %c8_i32, %c0_i32_16 : i32
      %c1_i32 = arith.constant 1 : i32
      %29 = arith.select %28, %c1_i32, %c8_i32 : i32
      %30 = vector.broadcast %29 : i32 to vector<64x128xi32>
      %31 = arith.remsi %27, %30 : vector<64x128xi32>
      %c0_i32_17 = arith.constant 0 : i32
      %32 = vector.broadcast %c0_i32_17 : i32 to vector<64x128xi32>
      %33 = arith.cmpi ne, %31, %32 : vector<64x128xi32>
      %c0_i32_18 = arith.constant 0 : i32
      %34 = vector.broadcast %c0_i32_18 : i32 to vector<64x128xi32>
      %35 = arith.cmpi slt, %31, %34 : vector<64x128xi32>
      %c0_i32_19 = arith.constant 0 : i32
      %36 = arith.cmpi slt, %29, %c0_i32_19 : i32
      %37 = vector.broadcast %36 : i1 to vector<64x128xi1>
      %38 = vector.broadcast %37 : vector<64x128xi1> to vector<64x128xi1>
      %39 = arith.xori %35, %38 : vector<64x128xi1>
      %40 = arith.andi %39, %33 : vector<64x128xi1>
      %41 = vector.broadcast %29 : i32 to vector<64x128xi32>
      %42 = arith.addi %31, %41 : vector<64x128xi32>
      %43 = arith.select %40, %42, %31 : vector<64x128xi1>, vector<64x128xi32>
      %c6_i32 = arith.constant 6 : i32
      %44 = arith.addi %c6_i32, %24 : i32
      %45 = arith.index_cast %44 : i32 to index
      %c0_20 = arith.constant 0 : index
      %46 = vector.load %arg8[%45, %c0_20] : memref<112x128xf32, #tpu.memory_space<vmem>>, vector<64x128xf32>
      %47 = vector.extract_strided_slice %11 {offsets = [0, 0], sizes = [1, 128], strides = [1, 1]} : vector<25x128xf32> to vector<1x128xf32>
      %48 = vector.shape_cast %47 : vector<1x128xf32> to vector<128xf32>
      %49 = vector.shape_cast %48 : vector<128xf32> to vector<1x128xf32>
      %50 = vector.broadcast %49 : vector<1x128xf32> to vector<64x128xf32>
      %51 = arith.mulf %46, %50 : vector<64x128xf32>
      %c14_i32 = arith.constant 14 : i32
      %52 = arith.addi %c14_i32, %24 : i32
      %53 = arith.index_cast %52 : i32 to index
      %c0_21 = arith.constant 0 : index
      %54 = vector.load %arg8[%53, %c0_21] : memref<112x128xf32, #tpu.memory_space<vmem>>, vector<64x128xf32>
      %55 = vector.extract_strided_slice %11 {offsets = [5, 0], sizes = [1, 128], strides = [1, 1]} : vector<25x128xf32> to vector<1x128xf32>
      %56 = vector.shape_cast %55 : vector<1x128xf32> to vector<128xf32>
      %57 = vector.shape_cast %56 : vector<128xf32> to vector<1x128xf32>
      %58 = vector.broadcast %57 : vector<1x128xf32> to vector<64x128xf32>
      %59 = arith.mulf %54, %58 : vector<64x128xf32>
      %60 = arith.addf %51, %59 : vector<64x128xf32>
      %c22_i32 = arith.constant 22 : i32
      %61 = arith.addi %c22_i32, %24 : i32
      %62 = arith.index_cast %61 : i32 to index
      %c0_22 = arith.constant 0 : index
      %63 = vector.load %arg8[%62, %c0_22] : memref<112x128xf32, #tpu.memory_space<vmem>>, vector<64x128xf32>
      %64 = vector.extract_strided_slice %11 {offsets = [10, 0], sizes = [1, 128], strides = [1, 1]} : vector<25x128xf32> to vector<1x128xf32>
      %65 = vector.shape_cast %64 : vector<1x128xf32> to vector<128xf32>
      %66 = vector.shape_cast %65 : vector<128xf32> to vector<1x128xf32>
      %67 = vector.broadcast %66 : vector<1x128xf32> to vector<64x128xf32>
      %68 = arith.mulf %63, %67 : vector<64x128xf32>
      %69 = arith.addf %60, %68 : vector<64x128xf32>
      %c30_i32 = arith.constant 30 : i32
      %70 = arith.addi %c30_i32, %24 : i32
      %71 = arith.index_cast %70 : i32 to index
      %c0_23 = arith.constant 0 : index
      %72 = vector.load %arg8[%71, %c0_23] : memref<112x128xf32, #tpu.memory_space<vmem>>, vector<64x128xf32>
      %73 = vector.extract_strided_slice %11 {offsets = [15, 0], sizes = [1, 128], strides = [1, 1]} : vector<25x128xf32> to vector<1x128xf32>
      %74 = vector.shape_cast %73 : vector<1x128xf32> to vector<128xf32>
      %75 = vector.shape_cast %74 : vector<128xf32> to vector<1x128xf32>
      %76 = vector.broadcast %75 : vector<1x128xf32> to vector<64x128xf32>
      %77 = arith.mulf %72, %76 : vector<64x128xf32>
      %78 = arith.addf %69, %77 : vector<64x128xf32>
      %c38_i32 = arith.constant 38 : i32
      %79 = arith.addi %c38_i32, %24 : i32
      %80 = arith.index_cast %79 : i32 to index
      %c0_24 = arith.constant 0 : index
      %81 = vector.load %arg8[%80, %c0_24] : memref<112x128xf32, #tpu.memory_space<vmem>>, vector<64x128xf32>
      %82 = vector.extract_strided_slice %11 {offsets = [20, 0], sizes = [1, 128], strides = [1, 1]} : vector<25x128xf32> to vector<1x128xf32>
      %83 = vector.shape_cast %82 : vector<1x128xf32> to vector<128xf32>
      %84 = vector.shape_cast %83 : vector<128xf32> to vector<1x128xf32>
      %85 = vector.broadcast %84 : vector<1x128xf32> to vector<64x128xf32>
      %86 = arith.mulf %81, %85 : vector<64x128xf32>
      %87 = arith.addf %78, %86 : vector<64x128xf32>
      %c-2_i32 = arith.constant -2 : i32
      %88 = vector.broadcast %c-2_i32 : i32 to vector<64x128xi32>
      %89 = arith.addi %43, %88 : vector<64x128xi32>
      %c0_i32_25 = arith.constant 0 : i32
      %90 = vector.broadcast %c0_i32_25 : i32 to vector<64x128xi32>
      %91 = arith.cmpi sge, %89, %90 : vector<64x128xi32>
      %c8_i32_26 = arith.constant 8 : i32
      %92 = vector.broadcast %c8_i32_26 : i32 to vector<64x128xi32>
      %93 = arith.cmpi slt, %89, %92 : vector<64x128xi32>
      %94 = arith.andi %91, %93 : vector<64x128xi1>
      %cst_27 = arith.constant 0.000000e+00 : f32
      %95 = vector.broadcast %cst_27 : f32 to vector<64x128xf32>
      %96 = arith.select %94, %87, %95 : vector<64x128xi1>, vector<64x128xf32>
      %c7_i32 = arith.constant 7 : i32
      %97 = arith.addi %c7_i32, %24 : i32
      %98 = arith.index_cast %97 : i32 to index
      %c0_28 = arith.constant 0 : index
      %99 = vector.load %arg8[%98, %c0_28] : memref<112x128xf32, #tpu.memory_space<vmem>>, vector<64x128xf32>
      %100 = vector.extract_strided_slice %11 {offsets = [1, 0], sizes = [1, 128], strides = [1, 1]} : vector<25x128xf32> to vector<1x128xf32>
      %101 = vector.shape_cast %100 : vector<1x128xf32> to vector<128xf32>
      %102 = vector.shape_cast %101 : vector<128xf32> to vector<1x128xf32>
      %103 = vector.broadcast %102 : vector<1x128xf32> to vector<64x128xf32>
      %104 = arith.mulf %99, %103 : vector<64x128xf32>
      %c15_i32 = arith.constant 15 : i32
      %105 = arith.addi %c15_i32, %24 : i32
      %106 = arith.index_cast %105 : i32 to index
      %c0_29 = arith.constant 0 : index
      %107 = vector.load %arg8[%106, %c0_29] : memref<112x128xf32, #tpu.memory_space<vmem>>, vector<64x128xf32>
      %108 = vector.extract_strided_slice %11 {offsets = [6, 0], sizes = [1, 128], strides = [1, 1]} : vector<25x128xf32> to vector<1x128xf32>
      %109 = vector.shape_cast %108 : vector<1x128xf32> to vector<128xf32>
      %110 = vector.shape_cast %109 : vector<128xf32> to vector<1x128xf32>
      %111 = vector.broadcast %110 : vector<1x128xf32> to vector<64x128xf32>
      %112 = arith.mulf %107, %111 : vector<64x128xf32>
      %113 = arith.addf %104, %112 : vector<64x128xf32>
      %c23_i32 = arith.constant 23 : i32
      %114 = arith.addi %c23_i32, %24 : i32
      %115 = arith.index_cast %114 : i32 to index
      %c0_30 = arith.constant 0 : index
      %116 = vector.load %arg8[%115, %c0_30] : memref<112x128xf32, #tpu.memory_space<vmem>>, vector<64x128xf32>
      %117 = vector.extract_strided_slice %11 {offsets = [11, 0], sizes = [1, 128], strides = [1, 1]} : vector<25x128xf32> to vector<1x128xf32>
      %118 = vector.shape_cast %117 : vector<1x128xf32> to vector<128xf32>
      %119 = vector.shape_cast %118 : vector<128xf32> to vector<1x128xf32>
      %120 = vector.broadcast %119 : vector<1x128xf32> to vector<64x128xf32>
      %121 = arith.mulf %116, %120 : vector<64x128xf32>
      %122 = arith.addf %113, %121 : vector<64x128xf32>
      %c31_i32 = arith.constant 31 : i32
      %123 = arith.addi %c31_i32, %24 : i32
      %124 = arith.index_cast %123 : i32 to index
      %c0_31 = arith.constant 0 : index
      %125 = vector.load %arg8[%124, %c0_31] : memref<112x128xf32, #tpu.memory_space<vmem>>, vector<64x128xf32>
      %126 = vector.extract_strided_slice %11 {offsets = [16, 0], sizes = [1, 128], strides = [1, 1]} : vector<25x128xf32> to vector<1x128xf32>
      %127 = vector.shape_cast %126 : vector<1x128xf32> to vector<128xf32>
      %128 = vector.shape_cast %127 : vector<128xf32> to vector<1x128xf32>
      %129 = vector.broadcast %128 : vector<1x128xf32> to vector<64x128xf32>
      %130 = arith.mulf %125, %129 : vector<64x128xf32>
      %131 = arith.addf %122, %130 : vector<64x128xf32>
      %c39_i32 = arith.constant 39 : i32
      %132 = arith.addi %c39_i32, %24 : i32
      %133 = arith.index_cast %132 : i32 to index
      %c0_32 = arith.constant 0 : index
      %134 = vector.load %arg8[%133, %c0_32] : memref<112x128xf32, #tpu.memory_space<vmem>>, vector<64x128xf32>
      %135 = vector.extract_strided_slice %11 {offsets = [21, 0], sizes = [1, 128], strides = [1, 1]} : vector<25x128xf32> to vector<1x128xf32>
      %136 = vector.shape_cast %135 : vector<1x128xf32> to vector<128xf32>
      %137 = vector.shape_cast %136 : vector<128xf32> to vector<1x128xf32>
      %138 = vector.broadcast %137 : vector<1x128xf32> to vector<64x128xf32>
      %139 = arith.mulf %134, %138 : vector<64x128xf32>
      %140 = arith.addf %131, %139 : vector<64x128xf32>
      %c-1_i32 = arith.constant -1 : i32
      %141 = vector.broadcast %c-1_i32 : i32 to vector<64x128xi32>
      %142 = arith.addi %43, %141 : vector<64x128xi32>
      %c0_i32_33 = arith.constant 0 : i32
      %143 = vector.broadcast %c0_i32_33 : i32 to vector<64x128xi32>
      %144 = arith.cmpi sge, %142, %143 : vector<64x128xi32>
      %c8_i32_34 = arith.constant 8 : i32
      %145 = vector.broadcast %c8_i32_34 : i32 to vector<64x128xi32>
      %146 = arith.cmpi slt, %142, %145 : vector<64x128xi32>
      %147 = arith.andi %144, %146 : vector<64x128xi1>
      %cst_35 = arith.constant 0.000000e+00 : f32
      %148 = vector.broadcast %cst_35 : f32 to vector<64x128xf32>
      %149 = arith.select %147, %140, %148 : vector<64x128xi1>, vector<64x128xf32>
      %150 = arith.addf %96, %149 : vector<64x128xf32>
      %c8_i32_36 = arith.constant 8 : i32
      %151 = arith.addi %c8_i32_36, %24 : i32
      %152 = arith.index_cast %151 : i32 to index
      %c0_37 = arith.constant 0 : index
      %153 = vector.load %arg8[%152, %c0_37] : memref<112x128xf32, #tpu.memory_space<vmem>>, vector<64x128xf32>
      %154 = vector.extract_strided_slice %11 {offsets = [2, 0], sizes = [1, 128], strides = [1, 1]} : vector<25x128xf32> to vector<1x128xf32>
      %155 = vector.shape_cast %154 : vector<1x128xf32> to vector<128xf32>
      %156 = vector.shape_cast %155 : vector<128xf32> to vector<1x128xf32>
      %157 = vector.broadcast %156 : vector<1x128xf32> to vector<64x128xf32>
      %158 = arith.mulf %153, %157 : vector<64x128xf32>
      %c16_i32 = arith.constant 16 : i32
      %159 = arith.addi %c16_i32, %24 : i32
      %160 = arith.index_cast %159 : i32 to index
      %c0_38 = arith.constant 0 : index
      %161 = vector.load %arg8[%160, %c0_38] : memref<112x128xf32, #tpu.memory_space<vmem>>, vector<64x128xf32>
      %162 = vector.extract_strided_slice %11 {offsets = [7, 0], sizes = [1, 128], strides = [1, 1]} : vector<25x128xf32> to vector<1x128xf32>
      %163 = vector.shape_cast %162 : vector<1x128xf32> to vector<128xf32>
      %164 = vector.shape_cast %163 : vector<128xf32> to vector<1x128xf32>
      %165 = vector.broadcast %164 : vector<1x128xf32> to vector<64x128xf32>
      %166 = arith.mulf %161, %165 : vector<64x128xf32>
      %167 = arith.addf %158, %166 : vector<64x128xf32>
      %c24_i32 = arith.constant 24 : i32
      %168 = arith.addi %c24_i32, %24 : i32
      %169 = arith.index_cast %168 : i32 to index
      %c0_39 = arith.constant 0 : index
      %170 = vector.load %arg8[%169, %c0_39] : memref<112x128xf32, #tpu.memory_space<vmem>>, vector<64x128xf32>
      %171 = vector.extract_strided_slice %11 {offsets = [12, 0], sizes = [1, 128], strides = [1, 1]} : vector<25x128xf32> to vector<1x128xf32>
      %172 = vector.shape_cast %171 : vector<1x128xf32> to vector<128xf32>
      %173 = vector.shape_cast %172 : vector<128xf32> to vector<1x128xf32>
      %174 = vector.broadcast %173 : vector<1x128xf32> to vector<64x128xf32>
      %175 = arith.mulf %170, %174 : vector<64x128xf32>
      %176 = arith.addf %167, %175 : vector<64x128xf32>
      %c32_i32 = arith.constant 32 : i32
      %177 = arith.addi %c32_i32, %24 : i32
      %178 = arith.index_cast %177 : i32 to index
      %c0_40 = arith.constant 0 : index
      %179 = vector.load %arg8[%178, %c0_40] : memref<112x128xf32, #tpu.memory_space<vmem>>, vector<64x128xf32>
      %180 = vector.extract_strided_slice %11 {offsets = [17, 0], sizes = [1, 128], strides = [1, 1]} : vector<25x128xf32> to vector<1x128xf32>
      %181 = vector.shape_cast %180 : vector<1x128xf32> to vector<128xf32>
      %182 = vector.shape_cast %181 : vector<128xf32> to vector<1x128xf32>
      %183 = vector.broadcast %182 : vector<1x128xf32> to vector<64x128xf32>
      %184 = arith.mulf %179, %183 : vector<64x128xf32>
      %185 = arith.addf %176, %184 : vector<64x128xf32>
      %c40_i32 = arith.constant 40 : i32
      %186 = arith.addi %c40_i32, %24 : i32
      %187 = arith.index_cast %186 : i32 to index
      %c0_41 = arith.constant 0 : index
      %188 = vector.load %arg8[%187, %c0_41] : memref<112x128xf32, #tpu.memory_space<vmem>>, vector<64x128xf32>
      %189 = vector.extract_strided_slice %11 {offsets = [22, 0], sizes = [1, 128], strides = [1, 1]} : vector<25x128xf32> to vector<1x128xf32>
      %190 = vector.shape_cast %189 : vector<1x128xf32> to vector<128xf32>
      %191 = vector.shape_cast %190 : vector<128xf32> to vector<1x128xf32>
      %192 = vector.broadcast %191 : vector<1x128xf32> to vector<64x128xf32>
      %193 = arith.mulf %188, %192 : vector<64x128xf32>
      %194 = arith.addf %185, %193 : vector<64x128xf32>
      %195 = arith.addf %150, %194 : vector<64x128xf32>
      %c9_i32 = arith.constant 9 : i32
      %196 = arith.addi %c9_i32, %24 : i32
      %197 = arith.index_cast %196 : i32 to index
      %c0_42 = arith.constant 0 : index
      %198 = vector.load %arg8[%197, %c0_42] : memref<112x128xf32, #tpu.memory_space<vmem>>, vector<64x128xf32>
      %199 = vector.extract_strided_slice %11 {offsets = [3, 0], sizes = [1, 128], strides = [1, 1]} : vector<25x128xf32> to vector<1x128xf32>
      %200 = vector.shape_cast %199 : vector<1x128xf32> to vector<128xf32>
      %201 = vector.shape_cast %200 : vector<128xf32> to vector<1x128xf32>
      %202 = vector.broadcast %201 : vector<1x128xf32> to vector<64x128xf32>
      %203 = arith.mulf %198, %202 : vector<64x128xf32>
      %c17_i32 = arith.constant 17 : i32
      %204 = arith.addi %c17_i32, %24 : i32
      %205 = arith.index_cast %204 : i32 to index
      %c0_43 = arith.constant 0 : index
      %206 = vector.load %arg8[%205, %c0_43] : memref<112x128xf32, #tpu.memory_space<vmem>>, vector<64x128xf32>
      %207 = vector.extract_strided_slice %11 {offsets = [8, 0], sizes = [1, 128], strides = [1, 1]} : vector<25x128xf32> to vector<1x128xf32>
      %208 = vector.shape_cast %207 : vector<1x128xf32> to vector<128xf32>
      %209 = vector.shape_cast %208 : vector<128xf32> to vector<1x128xf32>
      %210 = vector.broadcast %209 : vector<1x128xf32> to vector<64x128xf32>
      %211 = arith.mulf %206, %210 : vector<64x128xf32>
      %212 = arith.addf %203, %211 : vector<64x128xf32>
      %c25_i32 = arith.constant 25 : i32
      %213 = arith.addi %c25_i32, %24 : i32
      %214 = arith.index_cast %213 : i32 to index
      %c0_44 = arith.constant 0 : index
      %215 = vector.load %arg8[%214, %c0_44] : memref<112x128xf32, #tpu.memory_space<vmem>>, vector<64x128xf32>
      %216 = vector.extract_strided_slice %11 {offsets = [13, 0], sizes = [1, 128], strides = [1, 1]} : vector<25x128xf32> to vector<1x128xf32>
      %217 = vector.shape_cast %216 : vector<1x128xf32> to vector<128xf32>
      %218 = vector.shape_cast %217 : vector<128xf32> to vector<1x128xf32>
      %219 = vector.broadcast %218 : vector<1x128xf32> to vector<64x128xf32>
      %220 = arith.mulf %215, %219 : vector<64x128xf32>
      %221 = arith.addf %212, %220 : vector<64x128xf32>
      %c33_i32 = arith.constant 33 : i32
      %222 = arith.addi %c33_i32, %24 : i32
      %223 = arith.index_cast %222 : i32 to index
      %c0_45 = arith.constant 0 : index
      %224 = vector.load %arg8[%223, %c0_45] : memref<112x128xf32, #tpu.memory_space<vmem>>, vector<64x128xf32>
      %225 = vector.extract_strided_slice %11 {offsets = [18, 0], sizes = [1, 128], strides = [1, 1]} : vector<25x128xf32> to vector<1x128xf32>
      %226 = vector.shape_cast %225 : vector<1x128xf32> to vector<128xf32>
      %227 = vector.shape_cast %226 : vector<128xf32> to vector<1x128xf32>
      %228 = vector.broadcast %227 : vector<1x128xf32> to vector<64x128xf32>
      %229 = arith.mulf %224, %228 : vector<64x128xf32>
      %230 = arith.addf %221, %229 : vector<64x128xf32>
      %c41_i32 = arith.constant 41 : i32
      %231 = arith.addi %c41_i32, %24 : i32
      %232 = arith.index_cast %231 : i32 to index
      %c0_46 = arith.constant 0 : index
      %233 = vector.load %arg8[%232, %c0_46] : memref<112x128xf32, #tpu.memory_space<vmem>>, vector<64x128xf32>
      %234 = vector.extract_strided_slice %11 {offsets = [23, 0], sizes = [1, 128], strides = [1, 1]} : vector<25x128xf32> to vector<1x128xf32>
      %235 = vector.shape_cast %234 : vector<1x128xf32> to vector<128xf32>
      %236 = vector.shape_cast %235 : vector<128xf32> to vector<1x128xf32>
      %237 = vector.broadcast %236 : vector<1x128xf32> to vector<64x128xf32>
      %238 = arith.mulf %233, %237 : vector<64x128xf32>
      %239 = arith.addf %230, %238 : vector<64x128xf32>
      %c1_i32_47 = arith.constant 1 : i32
      %240 = vector.broadcast %c1_i32_47 : i32 to vector<64x128xi32>
      %241 = arith.addi %43, %240 : vector<64x128xi32>
      %c0_i32_48 = arith.constant 0 : i32
      %242 = vector.broadcast %c0_i32_48 : i32 to vector<64x128xi32>
      %243 = arith.cmpi sge, %241, %242 : vector<64x128xi32>
      %c8_i32_49 = arith.constant 8 : i32
      %244 = vector.broadcast %c8_i32_49 : i32 to vector<64x128xi32>
      %245 = arith.cmpi slt, %241, %244 : vector<64x128xi32>
      %246 = arith.andi %243, %245 : vector<64x128xi1>
      %cst_50 = arith.constant 0.000000e+00 : f32
      %247 = vector.broadcast %cst_50 : f32 to vector<64x128xf32>
      %248 = arith.select %246, %239, %247 : vector<64x128xi1>, vector<64x128xf32>
      %249 = arith.addf %195, %248 : vector<64x128xf32>
      %c10_i32 = arith.constant 10 : i32
      %250 = arith.addi %c10_i32, %24 : i32
      %251 = arith.index_cast %250 : i32 to index
      %c0_51 = arith.constant 0 : index
      %252 = vector.load %arg8[%251, %c0_51] : memref<112x128xf32, #tpu.memory_space<vmem>>, vector<64x128xf32>
      %253 = vector.extract_strided_slice %11 {offsets = [4, 0], sizes = [1, 128], strides = [1, 1]} : vector<25x128xf32> to vector<1x128xf32>
      %254 = vector.shape_cast %253 : vector<1x128xf32> to vector<128xf32>
      %255 = vector.shape_cast %254 : vector<128xf32> to vector<1x128xf32>
      %256 = vector.broadcast %255 : vector<1x128xf32> to vector<64x128xf32>
      %257 = arith.mulf %252, %256 : vector<64x128xf32>
      %c18_i32 = arith.constant 18 : i32
      %258 = arith.addi %c18_i32, %24 : i32
      %259 = arith.index_cast %258 : i32 to index
      %c0_52 = arith.constant 0 : index
      %260 = vector.load %arg8[%259, %c0_52] : memref<112x128xf32, #tpu.memory_space<vmem>>, vector<64x128xf32>
      %261 = vector.extract_strided_slice %11 {offsets = [9, 0], sizes = [1, 128], strides = [1, 1]} : vector<25x128xf32> to vector<1x128xf32>
      %262 = vector.shape_cast %261 : vector<1x128xf32> to vector<128xf32>
      %263 = vector.shape_cast %262 : vector<128xf32> to vector<1x128xf32>
      %264 = vector.broadcast %263 : vector<1x128xf32> to vector<64x128xf32>
      %265 = arith.mulf %260, %264 : vector<64x128xf32>
      %266 = arith.addf %257, %265 : vector<64x128xf32>
      %c26_i32 = arith.constant 26 : i32
      %267 = arith.addi %c26_i32, %24 : i32
      %268 = arith.index_cast %267 : i32 to index
      %c0_53 = arith.constant 0 : index
      %269 = vector.load %arg8[%268, %c0_53] : memref<112x128xf32, #tpu.memory_space<vmem>>, vector<64x128xf32>
      %270 = vector.extract_strided_slice %11 {offsets = [14, 0], sizes = [1, 128], strides = [1, 1]} : vector<25x128xf32> to vector<1x128xf32>
      %271 = vector.shape_cast %270 : vector<1x128xf32> to vector<128xf32>
      %272 = vector.shape_cast %271 : vector<128xf32> to vector<1x128xf32>
      %273 = vector.broadcast %272 : vector<1x128xf32> to vector<64x128xf32>
      %274 = arith.mulf %269, %273 : vector<64x128xf32>
      %275 = arith.addf %266, %274 : vector<64x128xf32>
      %c34_i32 = arith.constant 34 : i32
      %276 = arith.addi %c34_i32, %24 : i32
      %277 = arith.index_cast %276 : i32 to index
      %c0_54 = arith.constant 0 : index
      %278 = vector.load %arg8[%277, %c0_54] : memref<112x128xf32, #tpu.memory_space<vmem>>, vector<64x128xf32>
      %279 = vector.extract_strided_slice %11 {offsets = [19, 0], sizes = [1, 128], strides = [1, 1]} : vector<25x128xf32> to vector<1x128xf32>
      %280 = vector.shape_cast %279 : vector<1x128xf32> to vector<128xf32>
      %281 = vector.shape_cast %280 : vector<128xf32> to vector<1x128xf32>
      %282 = vector.broadcast %281 : vector<1x128xf32> to vector<64x128xf32>
      %283 = arith.mulf %278, %282 : vector<64x128xf32>
      %284 = arith.addf %275, %283 : vector<64x128xf32>
      %c42_i32 = arith.constant 42 : i32
      %285 = arith.addi %c42_i32, %24 : i32
      %286 = arith.index_cast %285 : i32 to index
      %c0_55 = arith.constant 0 : index
      %287 = vector.load %arg8[%286, %c0_55] : memref<112x128xf32, #tpu.memory_space<vmem>>, vector<64x128xf32>
      %288 = vector.extract_strided_slice %11 {offsets = [24, 0], sizes = [1, 128], strides = [1, 1]} : vector<25x128xf32> to vector<1x128xf32>
      %289 = vector.shape_cast %288 : vector<1x128xf32> to vector<128xf32>
      %290 = vector.shape_cast %289 : vector<128xf32> to vector<1x128xf32>
      %291 = vector.broadcast %290 : vector<1x128xf32> to vector<64x128xf32>
      %292 = arith.mulf %287, %291 : vector<64x128xf32>
      %293 = arith.addf %284, %292 : vector<64x128xf32>
      %c2_i32 = arith.constant 2 : i32
      %294 = vector.broadcast %c2_i32 : i32 to vector<64x128xi32>
      %295 = arith.addi %43, %294 : vector<64x128xi32>
      %c0_i32_56 = arith.constant 0 : i32
      %296 = vector.broadcast %c0_i32_56 : i32 to vector<64x128xi32>
      %297 = arith.cmpi sge, %295, %296 : vector<64x128xi32>
      %c8_i32_57 = arith.constant 8 : i32
      %298 = vector.broadcast %c8_i32_57 : i32 to vector<64x128xi32>
      %299 = arith.cmpi slt, %295, %298 : vector<64x128xi32>
      %300 = arith.andi %297, %299 : vector<64x128xi1>
      %cst_58 = arith.constant 0.000000e+00 : f32
      %301 = vector.broadcast %cst_58 : f32 to vector<64x128xf32>
      %302 = arith.select %300, %293, %301 : vector<64x128xi1>, vector<64x128xf32>
      %303 = arith.addf %249, %302 : vector<64x128xf32>
      %c8_i32_59 = arith.constant 8 : i32
      %304 = arith.addi %24, %c8_i32_59 : i32
      %305 = tpu.assume_multiple %304, 8 : i32
      %c0_60 = arith.constant 0 : index
      %306 = arith.index_cast %305 : i32 to index
      %c0_61 = arith.constant 0 : index
      %307 = vector.load %arg5[%c0_60, %306, %c0_61] : memref<1x72x128xf32, #tpu.memory_space<vmem>>, vector<1x64x128xf32>
      %308 = vector.shape_cast %307 : vector<1x64x128xf32> to vector<64x128xf32>
      %309 = vector.broadcast %12 : vector<1x128xf32> to vector<64x128xf32>
      %310 = arith.addf %303, %309 : vector<64x128xf32>
      %311 = arith.mulf %308, %310 : vector<64x128xf32>
      %c0_62 = arith.constant 0 : index
      %312 = arith.index_cast %305 : i32 to index
      %c0_63 = arith.constant 0 : index
      %313 = vector.load %arg7[%c0_62, %312, %c0_63] : memref<1x72x128xf32, #tpu.memory_space<vmem>>, vector<1x64x128xf32>
      %314 = vector.shape_cast %313 : vector<1x64x128xf32> to vector<64x128xf32>
      %315 = vector.shape_cast %311 : vector<64x128xf32> to vector<1x64x128xf32>
      tpu.vector_store %arg7[%c0_62, %312, %c0_63], %315 {strides = array<i32>} : memref<1x72x128xf32, #tpu.memory_space<vmem>>, vector<1x64x128xf32>,
      %c1_i32_64 = arith.constant 1 : i32
    } else {
    }
    return
  }
  func.func @transform_0(%arg0: i32, %arg1: i32, %arg2: memref<2xi32, #tpu.memory_space<smem>>) -> (i32, i32) {
    %c0_i32 = arith.constant 0 : i32
    %c0_i32_0 = arith.constant 0 : i32
    return %c0_i32, %arg1 : i32, i32
  }
  func.func @transform_1(%arg0: i32, %arg1: i32, %arg2: memref<2xi32, #tpu.memory_space<smem>>) -> (i32, i32) {
    %c0_i32 = arith.constant 0 : i32
    %c0_i32_0 = arith.constant 0 : i32
    return %c0_i32, %arg1 : i32, i32
  }
  func.func @transform_2(%arg0: i32, %arg1: i32, %arg2: memref<2xi32, #tpu.memory_space<smem>>) -> (i32, i32, i32) {
    %c0_i32 = arith.constant 0 : i32
    %c0_i32_0 = arith.constant 0 : i32
    return %arg0, %c0_i32, %arg1 : i32, i32, i32
  }
  func.func @transform_3(%arg0: i32, %arg1: i32, %arg2: memref<2xi32, #tpu.memory_space<smem>>) -> (i32, i32, i32) {
    %c0_i32 = arith.constant 0 : i32
    %c0_i32_0 = arith.constant 0 : i32
    return %arg0, %c0_i32, %arg1 : i32, i32, i32
  }
  func.func @transform_4(%arg0: i32, %arg1: i32, %arg2: memref<2xi32, #tpu.memory_space<smem>>) -> (i32, i32, i32) {
    %c0_i32 = arith.constant 0 : i32
    %c0_i32_0 = arith.constant 0 : i32
    return %arg0, %c0_i32, %arg1 : i32, i32, i32
  }
}

</mosaic_0001>

<llo_original>
// kernel: tpu_custom_call.1
$region0: #{tpu_custom_call.1}
  #allocation0 [shape = 'u32[]', space=smem, size = 0x4, offset = 0x4, fixed_abs, tag = 'smem constant byte address 0x4 - core index']
  #allocation1 [shape = 'u32[144,128]{1,0:T(1,128)}', space=vmem, size = 0x12000, scoped, tag = 'internal scratch']
  #allocation2 [shape = 'f32[112,128]{1,0:T(8,128)}', space=vmem, size = 0xe000, scoped, tag = 'scratch operand']
  #allocation3 [shape = 's32[1]{0}', space=sflag, size = 0x4, scoped, tag = 'scoped memory for tpu_custom_call.1']
  #allocation4 [shape = 'u8[512]{0}', space=smem, size = 0x200, scoped, tag = 'prefetched SMEM operand 0']
  %s0 = inlined_call_operand.hbm [shape: s32[2], index: 0, kind: input, shape index: {}]
  %s1 = inlined_call_operand.hbm [shape: f32[25,256], index: 1, kind: input, shape index: {}]
  %s2 = inlined_call_operand.vmem [shape: f32[1,256], index: 2, kind: input, shape index: {}]
  %s3 = inlined_call_operand.hbm [shape: f32[2,72,256], index: 3, kind: input, shape index: {}]
  %s4 = inlined_call_operand.hbm [shape: f32[2,72,256], index: 4, kind: input, shape index: {}]
  %s5 = inlined_call_operand.hbm [shape: f32[2,72,256], index: 5, kind: output, shape index: {}]
  %s6 = sld [smem:[#allocation0]]
  $region69: #{tpu_custom_call.1} parent=0
    _
  %s8 = ssub.s32 1, %s6
  %s9 = scalar_select 0, %s8, %s6
  %11 = dma.hbm_to_smem %s0, 16, [#allocation4], [#allocation3]
  %12 = dma.done [#allocation3], 16
  %13 = sfence
  $region1: #{tpu_custom_call.1} parent=0
    #allocation5 [shape = 'u8[32768]{0}', space=vmem, size = 0x8000, scoped, tag = 'input window, operand 1']
    #allocation6 [shape = 's32[2]{0}', space=sflag, size = 0x8, scoped, tag = 'scoped memory for tpu_custom_call.1']
    #allocation7 [shape = 's32[2]{0}', space=sflag, size = 0x8, scoped, tag = 'scoped memory for tpu_custom_call.1']
    #allocation8 [shape = 'u8[73728]{0}', space=vmem, size = 0x12000, scoped, tag = 'input window, operand 3']
    #allocation9 [shape = 's32[2]{0}', space=sflag, size = 0x8, scoped, tag = 'scoped memory for tpu_custom_call.1']
    #allocation10 [shape = 'u8[73728]{0}', space=vmem, size = 0x12000, scoped, tag = 'input window, operand 4']
    #allocation11 [shape = 'u8[73728]{0}', space=vmem, size = 0x12000, scoped, tag = 'output window, operand 0']
    %14 = vsyncpa [#allocation6], 0
    %s15 = scalar_lea.sflag [#allocation6], 1
    %16 = vsyncpa %s15, 0
    %17 = vsyncpa [#allocation9], 0
    %s18 = scalar_lea.sflag [#allocation9], 1
    %19 = vsyncpa %s18, 0
    %20 = vsyncpa [#allocation7], 0
    %s21 = scalar_lea.sflag [#allocation7], 1
    %22 = vsyncpa %s21, 0
    loop: start=0, step=1, limit=6
    $region2: #{tpu_custom_call.1} parent=1 // loop_pre_header
      _
    $region3: #{tpu_custom_call.1} parent=1 // loop_header
      %s24 = sphi 0, %s28
      %p25 = scmp.ge.s32.totalorder %s24, 6
      %s31 = sphi 0, %s43
      %s32 = sphi 0, %s39
      %s33 = sphi 0, %s31
      %s34 = sphi 0, %s32
      %s35 = sphi 0, %s33
      %s36 = sphi 0, %s34
      %s46 = sphi 0, %s48
      %s49 = sphi 0, %s46
      %s50 = sphi 0, %s49
      %s66 = sphi 0, %s50
      %s72 = sphi 0, %s74
      %s75 = sphi 0, %s72
      %s76 = sphi 0, %s75
      %s92 = sphi 0, %s76
      %s100 = sphi 0, %s102
      %s103 = sphi 0, %s100
      %s104 = sphi 0, %s103
      %s120 = sphi 0, %s104
      %s128 = sphi 0, %s130
      %s131 = sphi 0, %s128
      %s132 = sphi 0, %s131
      %s148 = sphi 0, %s132
      %s156 = sphi 0, %s158
      %s159 = sphi 0, %s156
      %s160 = sphi 0, %s159
      %s176 = sphi 0, %s160
    $region4: #{tpu_custom_call.1} parent=1 // loop_header_branch
      %27 = sbr.rel (%p25) target = $region8
    $region5: #{tpu_custom_call.1} parent=1 // loop_body
      %s29 = ssub.s32 %s24, 1
      %s30 = ssub.s32 %s24, 2
      %s37 = sadd.s32 1, %s32
      %p38 = scmp.ge.s32.totalorder %s37, 2
      %s39 = scalar_select %p38, 0, %s37
      %s40 = sadd.s32 1, %s31
      %s41 = scalar_select %p38, %s40, %s31
      %p42 = scmp.ge.s32.totalorder %s41, 2
      %s43 = scalar_select %p42, 0, %s41
      %s44 = ssub.s32 %s32, %s39
      %p45 = scmp.eq.s32.totalorder %s44, 0
      %s47 = sadd.s32 %s46, 1
      %s48 = scalar_select %p45, %s46, %s47
      %p51 = pneg %p45
      %p52 = scmp.eq.s32.totalorder %s24, 3
      %p53 = por %p51, %p52
      %p54 = scmp.ne.s32.totalorder %s46, %s49
      %p55 = scmp.eq.s32.totalorder %s24, 0
      %p56 = por %p54, %p55
      %p57 = scmp.ne.s32.totalorder %s46, %s49
      %p58 = scmp.eq.s32.totalorder %s29, 3
      %p59 = por %p57, %p58
      %p60 = scmp.ne.s32.totalorder %s49, %s50
      %p61 = scmp.eq.s32.totalorder %s29, 0
      %p62 = por %p60, %p61
      %p63 = scmp.ne.s32.totalorder %s49, %s50
      %p64 = scmp.eq.s32.totalorder %s30, 3
      %p65 = por %p63, %p64
      %p67 = scmp.ne.s32.totalorder %s50, %s66
      %p68 = scmp.eq.s32.totalorder %s30, 0
      %p69 = por %p67, %p68
      %s70 = ssub.s32 %s32, %s39
      %p71 = scmp.eq.s32.totalorder %s70, 0
      %s73 = sadd.s32 %s72, 1
      %s74 = scalar_select %p71, %s72, %s73
      %p77 = pneg %p71
      %p78 = scmp.eq.s32.totalorder %s24, 3
      %p79 = por %p77, %p78
      %p80 = scmp.ne.s32.totalorder %s72, %s75
      %p81 = scmp.eq.s32.totalorder %s24, 0
      %p82 = por %p80, %p81
      %p83 = scmp.ne.s32.totalorder %s72, %s75
      %p84 = scmp.eq.s32.totalorder %s29, 3
      %p85 = por %p83, %p84
      %p86 = scmp.ne.s32.totalorder %s75, %s76
      %p87 = scmp.eq.s32.totalorder %s29, 0
      %p88 = por %p86, %p87
      %p89 = scmp.ne.s32.totalorder %s75, %s76
      %p90 = scmp.eq.s32.totalorder %s30, 3
      %p91 = por %p89, %p90
      %p93 = scmp.ne.s32.totalorder %s76, %s92
      %p94 = scmp.eq.s32.totalorder %s30, 0
      %p95 = por %p93, %p94
      %s96 = ssub.s32 %s31, %s43
      %s97 = ssub.s32 %s32, %s39
      %s98 = sor.u32 %s96, %s97
      %p99 = scmp.eq.s32.totalorder %s98, 0
      %s101 = sadd.s32 %s100, 1
      %s102 = scalar_select %p99, %s100, %s101
      %p105 = pneg %p99
      %p106 = scmp.eq.s32.totalorder %s24, 3
      %p107 = por %p105, %p106
      %p108 = scmp.ne.s32.totalorder %s100, %s103
      %p109 = scmp.eq.s32.totalorder %s24, 0
      %p110 = por %p108, %p109
      %p111 = scmp.ne.s32.totalorder %s100, %s103
      %p112 = scmp.eq.s32.totalorder %s29, 3
      %p113 = por %p111, %p112
      %p114 = scmp.ne.s32.totalorder %s103, %s104
      %p115 = scmp.eq.s32.totalorder %s29, 0
      %p116 = por %p114, %p115
      %p117 = scmp.ne.s32.totalorder %s103, %s104
      %p118 = scmp.eq.s32.totalorder %s30, 3
      %p119 = por %p117, %p118
      %p121 = scmp.ne.s32.totalorder %s104, %s120
      %p122 = scmp.eq.s32.totalorder %s30, 0
      %p123 = por %p121, %p122
      %s124 = ssub.s32 %s31, %s43
      %s125 = ssub.s32 %s32, %s39
      %s126 = sor.u32 %s124, %s125
      %p127 = scmp.eq.s32.totalorder %s126, 0
      %s129 = sadd.s32 %s128, 1
      %s130 = scalar_select %p127, %s128, %s129
      %p133 = pneg %p127
      %p134 = scmp.eq.s32.totalorder %s24, 3
      %p135 = por %p133, %p134
      %p136 = scmp.ne.s32.totalorder %s128, %s131
      %p137 = scmp.eq.s32.totalorder %s24, 0
      %p138 = por %p136, %p137
      %p139 = scmp.ne.s32.totalorder %s128, %s131
      %p140 = scmp.eq.s32.totalorder %s29, 3
      %p141 = por %p139, %p140
      %p142 = scmp.ne.s32.totalorder %s131, %s132
      %p143 = scmp.eq.s32.totalorder %s29, 0
      %p144 = por %p142, %p143
      %p145 = scmp.ne.s32.totalorder %s131, %s132
      %p146 = scmp.eq.s32.totalorder %s30, 3
      %p147 = por %p145, %p146
      %p149 = scmp.ne.s32.totalorder %s132, %s148
      %p150 = scmp.eq.s32.totalorder %s30, 0
      %p151 = por %p149, %p150
      %s152 = ssub.s32 %s31, %s43
      %s153 = ssub.s32 %s32, %s39
      %s154 = sor.u32 %s152, %s153
      %p155 = scmp.eq.s32.totalorder %s154, 0
      %s157 = sadd.s32 %s156, 1
      %s158 = scalar_select %p155, %s156, %s157
      %p161 = pneg %p155
      %p162 = scmp.eq.s32.totalorder %s24, 3
      %p163 = por %p161, %p162
      %p164 = scmp.ne.s32.totalorder %s156, %s159
      %p165 = scmp.eq.s32.totalorder %s24, 0
      %p166 = por %p164, %p165
      %p167 = scmp.ne.s32.totalorder %s156, %s159
      %p168 = scmp.eq.s32.totalorder %s29, 3
      %p169 = por %p167, %p168
      %p170 = scmp.ne.s32.totalorder %s159, %s160
      %p171 = scmp.eq.s32.totalorder %s29, 0
      %p172 = por %p170, %p171
      %p173 = scmp.ne.s32.totalorder %s159, %s160
      %p174 = scmp.eq.s32.totalorder %s30, 3
      %p175 = por %p173, %p174
      %p177 = scmp.ne.s32.totalorder %s160, %s176
      %p178 = scmp.eq.s32.totalorder %s30, 0
      %p179 = por %p177, %p178
      %p180 = scmp.le.s32.totalorder 1, %s24
      %p181 = scmp.lt.s32.totalorder %s24, 5
      %p182 = pnand %p180, %p181
      %p183 = pneg %p182
      // Predicated region
      $region9: #{tpu_custom_call.1} parent=5 // pred_check
        _
      $region10: #{tpu_custom_call.1} parent=5 // pred_check_branch
        %185 = sbr.rel (%p182) target = $region12
      $region11: #{tpu_custom_call.1} parent=5 // pred_region
        %s186 = ssub.s32 %s24, 1
      $region12: #{tpu_custom_call.1} parent=5 // pred_fallthru
        _
      %p187 = scmp.lt.s32.totalorder %s24, 4
      // Predicated region
      $region13: #{tpu_custom_call.1} parent=5 // pred_check
        %p188 = pneg %p187
      $region14: #{tpu_custom_call.1} parent=5 // pred_check_branch
        %190 = sbr.rel (%p188) target = $region16
      $region15: #{tpu_custom_call.1} parent=5 // pred_region
        // Predicated region
        $region17: #{tpu_custom_call.1} parent=15 // pred_check
          %p191 = pneg %p56
        $region18: #{tpu_custom_call.1} parent=15 // pred_check_branch
          %193 = sbr.rel (%p191) target = $region20
        $region19: #{tpu_custom_call.1} parent=15 // pred_region
          %s194 = sand.u32 %s46, 1
          %s195 = scalar_lea.sflag [#allocation6], %s194
          %s196 = sand.u32 %s46, 1
          %s197 = smul.addr %s196, 32
          %s198 = scalar_lea.vmem [#allocation5], %s197
          %s200 = ssub.s32 512, 512
          %201 = vsyncadd %s195, %s200
          %s202 = smul.addr %s32, 128
          %s203 = scalar_lea.hbm %s1, %s202
          %s204 = sshll.u32 %s198, 4
          %s205 = int_to_ptr.vmem [resolvable:$true] %s204
          %210 = dma.hbm_to_vmem [thread:$0]  %s203, 512, %s205, %s195, 256, 128, 8
        $region20: #{tpu_custom_call.1} parent=15 // pred_fallthru
          _
        // Predicated region
        $region21: #{tpu_custom_call.1} parent=15 // pred_check
          %p211 = pneg %p82
        $region22: #{tpu_custom_call.1} parent=15 // pred_check_branch
          %213 = sbr.rel (%p211) target = $region24
        $region23: #{tpu_custom_call.1} parent=15 // pred_region
          %p214 = scmp.lt.s32.totalorder %s32, 1
          %s215 = scalar_select %p214, %s32, 1
          %s216 = scalar_lea.vmem %s2, %s215
        $region24: #{tpu_custom_call.1} parent=15 // pred_fallthru
          _
        // Predicated region
        $region25: #{tpu_custom_call.1} parent=15 // pred_check
          %p217 = pneg %p110
        $region26: #{tpu_custom_call.1} parent=15 // pred_check_branch
          %219 = sbr.rel (%p217) target = $region28
        $region27: #{tpu_custom_call.1} parent=15 // pred_region
          %s220 = sand.u32 %s24, 1
          %s221 = scalar_lea.sflag [#allocation9], %s220
          %s222 = sand.u32 %s100, 1
          %s223 = smul.addr %s222, 72
          %s224 = scalar_lea.vmem [#allocation8], %s223
          %s226 = ssub.s32 1152, 1152
          %227 = vsyncadd %s221, %s226
          %s228 = smul.addr %s31, 18
          %s229 = sadd.s32 %s32, %s228
          %s230 = smul.addr %s229, 128
          %s231 = scalar_lea.hbm %s3, %s230
          %s232 = sshll.u32 %s224, 4
          %s233 = int_to_ptr.vmem [resolvable:$true] %s232
          %238 = dma.hbm_to_vmem [thread:$0]  %s231, 1152, %s233, %s221, 256, 128, 8
        $region28: #{tpu_custom_call.1} parent=15 // pred_fallthru
          _
        // Predicated region
        $region29: #{tpu_custom_call.1} parent=15 // pred_check
          %p239 = pneg %p138
        $region30: #{tpu_custom_call.1} parent=15 // pred_check_branch
          %241 = sbr.rel (%p239) target = $region32
        $region31: #{tpu_custom_call.1} parent=15 // pred_region
          %s242 = sand.u32 %s24, 1
          %s243 = scalar_lea.sflag [#allocation9], %s242
          %s244 = sand.u32 %s128, 1
          %s245 = smul.addr %s244, 72
          %s246 = scalar_lea.vmem [#allocation10], %s245
          %s248 = ssub.s32 1152, 1152
          %249 = vsyncadd %s243, %s248
          %s250 = smul.addr %s31, 18
          %s251 = sadd.s32 %s32, %s250
          %s252 = smul.addr %s251, 128
          %s253 = scalar_lea.hbm %s4, %s252
          %s254 = sshll.u32 %s246, 4
          %s255 = int_to_ptr.vmem [resolvable:$true] %s254
          %260 = dma.hbm_to_vmem [thread:$0]  %s253, 1152, %s255, %s243, 256, 128, 8
        $region32: #{tpu_custom_call.1} parent=15 // pred_fallthru
          _
      $region16: #{tpu_custom_call.1} parent=5 // pred_fallthru
        _
      %p261 = scmp.le.s32.totalorder 1, %s24
      %p262 = scmp.lt.s32.totalorder %s24, 5
      %p263 = pnand %p261, %p262
      %p264 = pneg %p263
      // Predicated region
      $region33: #{tpu_custom_call.1} parent=5 // pred_check
        _
      $region34: #{tpu_custom_call.1} parent=5 // pred_check_branch
        %266 = sbr.rel (%p263) target = $region36
      $region35: #{tpu_custom_call.1} parent=5 // pred_region
        %s267 = ssub.s32 %s24, 1
        %s268 = sand.u32 %s49, 1
        %s269 = scalar_lea.sflag [#allocation6], %s268
        %s270 = sand.u32 %s49, 1
        %s271 = smul.addr %s270, 32
        %s272 = scalar_lea.vmem [#allocation5], %s271
        // Predicated region
        $region37: #{tpu_custom_call.1} parent=35 // pred_check
          %p273 = pneg %p62
        $region38: #{tpu_custom_call.1} parent=35 // pred_check_branch
          %275 = sbr.rel (%p273) target = $region40
        $region39: #{tpu_custom_call.1} parent=35 // pred_region
          %276 = dma.done %s269, 512
        $region40: #{tpu_custom_call.1} parent=35 // pred_fallthru
          _
        %s277 = sand.u32 %s29, 1
        %s278 = scalar_lea.sflag [#allocation9], %s277
        %s279 = sand.u32 %s103, 1
        %s280 = smul.addr %s279, 72
        %s281 = scalar_lea.vmem [#allocation8], %s280
        // Predicated region
        $region41: #{tpu_custom_call.1} parent=35 // pred_check
          %p282 = pneg %p116
        $region42: #{tpu_custom_call.1} parent=35 // pred_check_branch
          %284 = sbr.rel (%p282) target = $region44
        $region43: #{tpu_custom_call.1} parent=35 // pred_region
          %285 = dma.done %s278, 1152
        $region44: #{tpu_custom_call.1} parent=35 // pred_fallthru
          _
        %s286 = sand.u32 %s29, 1
        %s287 = scalar_lea.sflag [#allocation9], %s286
        %s288 = sand.u32 %s131, 1
        %s289 = smul.addr %s288, 72
        %s290 = scalar_lea.vmem [#allocation10], %s289
        // Predicated region
        $region45: #{tpu_custom_call.1} parent=35 // pred_check
          %p291 = pneg %p144
        $region46: #{tpu_custom_call.1} parent=35 // pred_check_branch
          %293 = sbr.rel (%p291) target = $region48
        $region47: #{tpu_custom_call.1} parent=35 // pred_region
          %294 = dma.done %s287, 1152
        $region48: #{tpu_custom_call.1} parent=35 // pred_fallthru
          _
        %s295 = sand.u32 %s49, 1
        %s296 = scalar_lea.sflag [#allocation6], %s295
        %s297 = sand.u32 %s49, 1
        %s298 = smul.addr %s297, 32
        %s299 = scalar_lea.vmem [#allocation5], %s298
        %p300 = pneg %p62
        %p301 = pneg %p59
        %p302 = scmp.lt.s32.totalorder %s34, 1
        %s303 = scalar_select %p302, %s34, 1
        %s304 = scalar_lea.vmem %s2, %s303
        %p305 = pneg %p88
        %p306 = pneg %p85
        %s307 = sand.u32 %s29, 1
        %s308 = scalar_lea.sflag [#allocation9], %s307
        %s309 = sand.u32 %s103, 1
        %s310 = smul.addr %s309, 72
        %s311 = scalar_lea.vmem [#allocation8], %s310
        %p312 = pneg %p116
        %p313 = pneg %p113
        %s314 = sand.u32 %s29, 1
        %s315 = scalar_lea.sflag [#allocation9], %s314
        %s316 = sand.u32 %s131, 1
        %s317 = smul.addr %s316, 72
        %s318 = scalar_lea.vmem [#allocation10], %s317
        %p319 = pneg %p144
        %p320 = pneg %p141
        %p321 = pneg %p172
        %p322 = pneg %p169
        %s323 = sand.u32 %s159, 1
        %s324 = scalar_lea.sflag [#allocation7], %s323
        %s325 = sand.u32 %s159, 1
        %s326 = smul.addr %s325, 72
        %s327 = scalar_lea.vmem [#allocation11], %s326
        %p328 = scmp.lt.s32.totalorder %s34, 1
        %s329 = scalar_select %p328, %s34, 1
        %s330 = scalar_lea.vmem %s2, %s329
        %331 = vst [vmem:[#allocation2] sm:$0xff] 0.0
        %332 = vst [vmem:[#allocation2 + $0x8] sm:$0xff] 0.0
        %333 = vst [vmem:[#allocation2 + $0x10] sm:$0xff] 0.0
        %334 = vst [vmem:[#allocation2 + $0x58] sm:$0xff] 0.0
        %335 = vst [vmem:[#allocation2 + $0x60] sm:$0xff] 0.0
        %336 = vst [vmem:[#allocation2 + $0x68] sm:$0xff] 0.0
        %v337 = vld [vmem:[%s290 + $0x8] sm:$0xff]
        %v338 = vld [vmem:[%s290 + $0x10] sm:$0xff]
        %v339 = vld [vmem:[%s290 + $0x18] sm:$0xff]
        %v340 = vld [vmem:[%s290 + $0x20] sm:$0xff]
        %v341 = vld [vmem:[%s290 + $0x28] sm:$0xff]
        %v342 = vld [vmem:[%s290 + $0x30] sm:$0xff]
        %v343 = vld [vmem:[%s290 + $0x38] sm:$0xff]
        %v344 = vld [vmem:[%s290 + $0x40] sm:$0xff]
        %345 = vst [vmem:[#allocation2 + $0x18] sm:$0xff] %v337
        %346 = vst [vmem:[#allocation2 + $0x20] sm:$0xff] %v338
        %347 = vst [vmem:[#allocation2 + $0x28] sm:$0xff] %v339
        %348 = vst [vmem:[#allocation2 + $0x30] sm:$0xff] %v340
        %349 = vst [vmem:[#allocation2 + $0x38] sm:$0xff] %v341
        %350 = vst [vmem:[#allocation2 + $0x40] sm:$0xff] %v342
        %351 = vst [vmem:[#allocation2 + $0x48] sm:$0xff] %v343
        %352 = vst [vmem:[#allocation2 + $0x50] sm:$0xff] %v344
        %353 = vst [vmem:[%s327] sm:$0xff] 0.0
        %v354 = vld [vmem:[%s272] sm:$0xff]
        %v355 = vld [vmem:[%s272 + $0x8] sm:$0xff]
        %v356 = vld [vmem:[%s272 + $0x10] sm:$0xff]
        %v357 = vld [vmem:[%s272 + $0x18] sm:$0x1]
        %v358 = vld [vmem:[%s330] sm:$0x1]
        %s359 = sld [smem:[#allocation4 + %s34]]
        %p360 = scmp.eq.s32.totalorder %s359, 3
        // Predicated region
        $region49: #{tpu_custom_call.1} parent=35 // pred_check
          %p361 = pneg %p360
        $region50: #{tpu_custom_call.1} parent=35 // pred_check_branch
          %363 = sbr.rel (%p361) target = $region52
        $region51: #{tpu_custom_call.1} parent=35 // pred_region
          %v364 = vlaneseq
          %v365 = vshrl.u32 %v364, 7
          %v366 = vadd.s32 %v365, 8
          %v367 = vadd.s32 %v365, 16
          %v368 = vadd.s32 %v365, 24
          %v369 = vadd.s32 %v365, 32
          %v370 = vadd.s32 %v365, 40
          %v371 = vadd.s32 %v365, 48
          %v372 = vadd.s32 %v365, 56
          %v373 = vstv 0
          %v374 = vadd.s32 %v373, %v365
          %v375 = vadd.s32 %v373, %v366
          %v376 = vadd.s32 %v373, %v367
          %v377 = vadd.s32 %v373, %v368
          %v378 = vadd.s32 %v373, %v369
          %v379 = vadd.s32 %v373, %v370
          %v380 = vadd.s32 %v373, %v371
          %v381 = vadd.s32 %v373, %v372
          %vm382 = vcmp.lt.s32.totalorder %v374, 0
          %v383 = vsub.s32 0, %v374
          %v384 = vsel %vm382, %v383, %v374
          %v385 = vshrl.u32 %v384, 3
          %v386 = vand.u32 %v384, 7
          %v387 = vsub.s32 0, %v386
          %v388 = vsel %vm382, %v387, %v386
          %vm389 = vcmp.lt.s32.totalorder %v375, 0
          %v390 = vsub.s32 0, %v375
          %v391 = vsel %vm389, %v390, %v375
          %v392 = vshrl.u32 %v391, 3
          %v393 = vand.u32 %v391, 7
          %v394 = vsub.s32 0, %v393
          %v395 = vsel %vm389, %v394, %v393
          %vm396 = vcmp.lt.s32.totalorder %v376, 0
          %v397 = vsub.s32 0, %v376
          %v398 = vsel %vm396, %v397, %v376
          %v399 = vshrl.u32 %v398, 3
          %v400 = vand.u32 %v398, 7
          %v401 = vsub.s32 0, %v400
          %v402 = vsel %vm396, %v401, %v400
          %vm403 = vcmp.lt.s32.totalorder %v377, 0
          %v404 = vsub.s32 0, %v377
          %v405 = vsel %vm403, %v404, %v377
          %v406 = vshrl.u32 %v405, 3
          %v407 = vand.u32 %v405, 7
          %v408 = vsub.s32 0, %v407
          %v409 = vsel %vm403, %v408, %v407
          %vm410 = vcmp.lt.s32.totalorder %v378, 0
          %v411 = vsub.s32 0, %v378
          %v412 = vsel %vm410, %v411, %v378
          %v413 = vshrl.u32 %v412, 3
          %v414 = vand.u32 %v412, 7
          %v415 = vsub.s32 0, %v414
          %v416 = vsel %vm410, %v415, %v414
          %vm417 = vcmp.lt.s32.totalorder %v379, 0
          %v418 = vsub.s32 0, %v379
          %v419 = vsel %vm417, %v418, %v379
          %v420 = vshrl.u32 %v419, 3
          %v421 = vand.u32 %v419, 7
          %v422 = vsub.s32 0, %v421
          %v423 = vsel %vm417, %v422, %v421
          %vm424 = vcmp.lt.s32.totalorder %v380, 0
          %v425 = vsub.s32 0, %v380
          %v426 = vsel %vm424, %v425, %v380
          %v427 = vshrl.u32 %v426, 3
          %v428 = vand.u32 %v426, 7
          %v429 = vsub.s32 0, %v428
          %v430 = vsel %vm424, %v429, %v428
          %vm431 = vcmp.lt.s32.totalorder %v381, 0
          %v432 = vsub.s32 0, %v381
          %v433 = vsel %vm431, %v432, %v381
          %v434 = vshrl.u32 %v433, 3
          %v435 = vand.u32 %v433, 7
          %v436 = vsub.s32 0, %v435
          %v437 = vsel %vm431, %v436, %v435
          %vm438 = vcmp.ne.s32.totalorder %v388, 0
          %vm439 = vcmp.ne.s32.totalorder %v395, 0
          %vm440 = vcmp.ne.s32.totalorder %v402, 0
          %vm441 = vcmp.ne.s32.totalorder %v409, 0
          %vm442 = vcmp.ne.s32.totalorder %v416, 0
          %vm443 = vcmp.ne.s32.totalorder %v423, 0
          %vm444 = vcmp.ne.s32.totalorder %v430, 0
          %vm445 = vcmp.ne.s32.totalorder %v437, 0
          %vm446 = vcmp.lt.s32.totalorder %v388, 0
          %vm447 = vcmp.lt.s32.totalorder %v395, 0
          %vm448 = vcmp.lt.s32.totalorder %v402, 0
          %vm449 = vcmp.lt.s32.totalorder %v409, 0
          %vm450 = vcmp.lt.s32.totalorder %v416, 0
          %vm451 = vcmp.lt.s32.totalorder %v423, 0
          %vm452 = vcmp.lt.s32.totalorder %v430, 0
          %vm453 = vcmp.lt.s32.totalorder %v437, 0
          %vm454 = vmand %vm446, %vm438
          %vm455 = vmand %vm447, %vm439
          %vm456 = vmand %vm448, %vm440
          %vm457 = vmand %vm449, %vm441
          %vm458 = vmand %vm450, %vm442
          %vm459 = vmand %vm451, %vm443
          %vm460 = vmand %vm452, %vm444
          %vm461 = vmand %vm453, %vm445
          %v462 = vadd.s32 %v388, 8
          %v463 = vadd.s32 %v395, 8
          %v464 = vadd.s32 %v402, 8
          %v465 = vadd.s32 %v409, 8
          %v466 = vadd.s32 %v416, 8
          %v467 = vadd.s32 %v423, 8
          %v468 = vadd.s32 %v430, 8
          %v469 = vadd.s32 %v437, 8
          %v470 = vsel %vm454, %v462, %v388
          %v471 = vsel %vm455, %v463, %v395
          %v472 = vsel %vm456, %v464, %v402
          %v473 = vsel %vm457, %v465, %v409
          %v474 = vsel %vm458, %v466, %v416
          %v475 = vsel %vm459, %v467, %v423
          %v476 = vsel %vm460, %v468, %v430
          %v477 = vsel %vm461, %v469, %v437
          %s478 = sadd.s32 0, 15
          %s479 = scalar_lea.vmem [#allocation2], %s478
          %v480 = vld [vmem:[%s479] sm:$0xff]
          %v481 = vld [vmem:[%s479 + $0x8] sm:$0xff]
          %v482 = vld [vmem:[%s479 + $0x10] sm:$0xff]
          %v483 = vld [vmem:[%s479 + $0x18] sm:$0xff]
          %v484 = vld [vmem:[%s479 + $0x20] sm:$0xff]
          %v485 = vld [vmem:[%s479 + $0x28] sm:$0xff]
          %v486 = vld [vmem:[%s479 + $0x30] sm:$0xff]
          %v487 = vld [vmem:[%s479 + $0x38] sm:$0xff]
          %v488 = vlaneseq
          %v489 = vshrl.u32 %v488, 7
          %v490 = vsub.s32 6, %v489
          %v491 = vrot.slane %v354, %v490
          %v492 = vmul.f32 %v480, %v491
          %v493 = vmul.f32 %v481, %v491
          %v494 = vmul.f32 %v482, %v491
          %v495 = vmul.f32 %v483, %v491
          %v496 = vmul.f32 %v484, %v491
          %v497 = vmul.f32 %v485, %v491
          %v498 = vmul.f32 %v486, %v491
          %v499 = vmul.f32 %v487, %v491
          %s500 = sadd.s32 0, 23
          %s501 = scalar_lea.vmem [#allocation2], %s500
          %v502 = vld [vmem:[%s501] sm:$0xff]
          %v503 = vld [vmem:[%s501 + $0x8] sm:$0xff]
          %v504 = vld [vmem:[%s501 + $0x10] sm:$0xff]
          %v505 = vld [vmem:[%s501 + $0x18] sm:$0xff]
          %v506 = vld [vmem:[%s501 + $0x20] sm:$0xff]
          %v507 = vld [vmem:[%s501 + $0x28] sm:$0xff]
          %v508 = vld [vmem:[%s501 + $0x30] sm:$0xff]
          %v509 = vld [vmem:[%s501 + $0x38] sm:$0xff]
          %v510 = vlaneseq
          %v511 = vshrl.u32 %v510, 7
          %v512 = vsub.s32 3, %v511
          %v513 = vrot.slane %v355, %v512
          %v514 = vmul.f32 %v502, %v513
          %v515 = vmul.f32 %v503, %v513
          %v516 = vmul.f32 %v504, %v513
          %v517 = vmul.f32 %v505, %v513
          %v518 = vmul.f32 %v506, %v513
          %v519 = vmul.f32 %v507, %v513
          %v520 = vmul.f32 %v508, %v513
          %v521 = vmul.f32 %v509, %v513
          %v522 = vadd.f32 %v492, %v514
          %v523 = vadd.f32 %v493, %v515
          %v524 = vadd.f32 %v494, %v516
          %v525 = vadd.f32 %v495, %v517
          %v526 = vadd.f32 %v496, %v518
          %v527 = vadd.f32 %v497, %v519
          %v528 = vadd.f32 %v498, %v520
          %v529 = vadd.f32 %v499, %v521
          %s530 = sadd.s32 0, 31
          %s531 = scalar_lea.vmem [#allocation2], %s530
          %v532 = vld [vmem:[%s531] sm:$0xff]
          %v533 = vld [vmem:[%s531 + $0x8] sm:$0xff]
          %v534 = vld [vmem:[%s531 + $0x10] sm:$0xff]
          %v535 = vld [vmem:[%s531 + $0x18] sm:$0xff]
          %v536 = vld [vmem:[%s531 + $0x20] sm:$0xff]
          %v537 = vld [vmem:[%s531 + $0x28] sm:$0xff]
          %v538 = vld [vmem:[%s531 + $0x30] sm:$0xff]
          %v539 = vld [vmem:[%s531 + $0x38] sm:$0xff]
          %v540 = vlaneseq
          %v541 = vshrl.u32 %v540, 7
          %v542 = vsub.s32 0, %v541
          %v543 = vrot.slane %v356, %v542
          %v544 = vmul.f32 %v532, %v543
          %v545 = vmul.f32 %v533, %v543
          %v546 = vmul.f32 %v534, %v543
          %v547 = vmul.f32 %v535, %v543
          %v548 = vmul.f32 %v536, %v543
          %v549 = vmul.f32 %v537, %v543
          %v550 = vmul.f32 %v538, %v543
          %v551 = vmul.f32 %v539, %v543
          %v552 = vadd.f32 %v522, %v544
          %v553 = vadd.f32 %v523, %v545
          %v554 = vadd.f32 %v524, %v546
          %v555 = vadd.f32 %v525, %v547
          %v556 = vadd.f32 %v526, %v548
          %v557 = vadd.f32 %v527, %v549
          %v558 = vadd.f32 %v528, %v550
          %v559 = vadd.f32 %v529, %v551
          %v560 = vadd.s32 %v470, 4294967295
          %v561 = vadd.s32 %v471, 4294967295
          %v562 = vadd.s32 %v472, 4294967295
          %v563 = vadd.s32 %v473, 4294967295
          %v564 = vadd.s32 %v474, 4294967295
          %v565 = vadd.s32 %v475, 4294967295
          %v566 = vadd.s32 %v476, 4294967295
          %v567 = vadd.s32 %v477, 4294967295
          %vm568 = vcmp.ge.s32.totalorder %v560, 0
          %vm569 = vcmp.ge.s32.totalorder %v561, 0
          %vm570 = vcmp.ge.s32.totalorder %v562, 0
          %vm571 = vcmp.ge.s32.totalorder %v563, 0
          %vm572 = vcmp.ge.s32.totalorder %v564, 0
          %vm573 = vcmp.ge.s32.totalorder %v565, 0
          %vm574 = vcmp.ge.s32.totalorder %v566, 0
          %vm575 = vcmp.ge.s32.totalorder %v567, 0
          %vm576 = vcmp.lt.s32.totalorder %v560, 8
          %vm577 = vcmp.lt.s32.totalorder %v561, 8
          %vm578 = vcmp.lt.s32.totalorder %v562, 8
          %vm579 = vcmp.lt.s32.totalorder %v563, 8
          %vm580 = vcmp.lt.s32.totalorder %v564, 8
          %vm581 = vcmp.lt.s32.totalorder %v565, 8
          %vm582 = vcmp.lt.s32.totalorder %v566, 8
          %vm583 = vcmp.lt.s32.totalorder %v567, 8
          %vm584 = vmand %vm568, %vm576
          %vm585 = vmand %vm569, %vm577
          %vm586 = vmand %vm570, %vm578
          %vm587 = vmand %vm571, %vm579
          %vm588 = vmand %vm572, %vm580
          %vm589 = vmand %vm573, %vm581
          %vm590 = vmand %vm574, %vm582
          %vm591 = vmand %vm575, %vm583
          %v592 = vsel %vm584, %v552, 0.0
          %v593 = vsel %vm585, %v553, 0.0
          %v594 = vsel %vm586, %v554, 0.0
          %v595 = vsel %vm587, %v555, 0.0
          %v596 = vsel %vm588, %v556, 0.0
          %v597 = vsel %vm589, %v557, 0.0
          %v598 = vsel %vm590, %v558, 0.0
          %v599 = vsel %vm591, %v559, 0.0
          %s600 = sadd.s32 0, 16
          %s601 = scalar_lea.vmem [#allocation2], %s600
          %v602 = vld [vmem:[%s601] sm:$0xff]
          %v603 = vld [vmem:[%s601 + $0x8] sm:$0xff]
          %v604 = vld [vmem:[%s601 + $0x10] sm:$0xff]
          %v605 = vld [vmem:[%s601 + $0x18] sm:$0xff]
          %v606 = vld [vmem:[%s601 + $0x20] sm:$0xff]
          %v607 = vld [vmem:[%s601 + $0x28] sm:$0xff]
          %v608 = vld [vmem:[%s601 + $0x30] sm:$0xff]
          %v609 = vld [vmem:[%s601 + $0x38] sm:$0xff]
          %v610 = vlaneseq
          %v611 = vshrl.u32 %v610, 7
          %v612 = vsub.s32 7, %v611
          %v613 = vrot.slane %v354, %v612
          %v614 = vmul.f32 %v602, %v613
          %v615 = vmul.f32 %v603, %v613
          %v616 = vmul.f32 %v604, %v613
          %v617 = vmul.f32 %v605, %v613
          %v618 = vmul.f32 %v606, %v613
          %v619 = vmul.f32 %v607, %v613
          %v620 = vmul.f32 %v608, %v613
          %v621 = vmul.f32 %v609, %v613
          %s622 = sadd.s32 0, 24
          %s623 = scalar_lea.vmem [#allocation2], %s622
          %v624 = vld [vmem:[%s623] sm:$0xff]
          %v625 = vld [vmem:[%s623 + $0x8] sm:$0xff]
          %v626 = vld [vmem:[%s623 + $0x10] sm:$0xff]
          %v627 = vld [vmem:[%s623 + $0x18] sm:$0xff]
          %v628 = vld [vmem:[%s623 + $0x20] sm:$0xff]
          %v629 = vld [vmem:[%s623 + $0x28] sm:$0xff]
          %v630 = vld [vmem:[%s623 + $0x30] sm:$0xff]
          %v631 = vld [vmem:[%s623 + $0x38] sm:$0xff]
          %v632 = vlaneseq
          %v633 = vshrl.u32 %v632, 7
          %v634 = vsub.s32 4, %v633
          %v635 = vrot.slane %v355, %v634
          %v636 = vmul.f32 %v624, %v635
          %v637 = vmul.f32 %v625, %v635
          %v638 = vmul.f32 %v626, %v635
          %v639 = vmul.f32 %v627, %v635
          %v640 = vmul.f32 %v628, %v635
          %v641 = vmul.f32 %v629, %v635
          %v642 = vmul.f32 %v630, %v635
          %v643 = vmul.f32 %v631, %v635
          %v644 = vadd.f32 %v614, %v636
          %v645 = vadd.f32 %v615, %v637
          %v646 = vadd.f32 %v616, %v638
          %v647 = vadd.f32 %v617, %v639
          %v648 = vadd.f32 %v618, %v640
          %v649 = vadd.f32 %v619, %v641
          %v650 = vadd.f32 %v620, %v642
          %v651 = vadd.f32 %v621, %v643
          %s652 = sadd.s32 0, 32
          %s653 = scalar_lea.vmem [#allocation2], %s652
          %v654 = vld [vmem:[%s653] sm:$0xff]
          %v655 = vld [vmem:[%s653 + $0x8] sm:$0xff]
          %v656 = vld [vmem:[%s653 + $0x10] sm:$0xff]
          %v657 = vld [vmem:[%s653 + $0x18] sm:$0xff]
          %v658 = vld [vmem:[%s653 + $0x20] sm:$0xff]
          %v659 = vld [vmem:[%s653 + $0x28] sm:$0xff]
          %v660 = vld [vmem:[%s653 + $0x30] sm:$0xff]
          %v661 = vld [vmem:[%s653 + $0x38] sm:$0xff]
          %v662 = vlaneseq
          %v663 = vshrl.u32 %v662, 7
          %v664 = vsub.s32 1, %v663
          %v665 = vrot.slane %v356, %v664
          %v666 = vmul.f32 %v654, %v665
          %v667 = vmul.f32 %v655, %v665
          %v668 = vmul.f32 %v656, %v665
          %v669 = vmul.f32 %v657, %v665
          %v670 = vmul.f32 %v658, %v665
          %v671 = vmul.f32 %v659, %v665
          %v672 = vmul.f32 %v660, %v665
          %v673 = vmul.f32 %v661, %v665
          %v674 = vadd.f32 %v644, %v666
          %v675 = vadd.f32 %v645, %v667
          %v676 = vadd.f32 %v646, %v668
          %v677 = vadd.f32 %v647, %v669
          %v678 = vadd.f32 %v648, %v670
          %v679 = vadd.f32 %v649, %v671
          %v680 = vadd.f32 %v650, %v672
          %v681 = vadd.f32 %v651, %v673
          %v682 = vadd.f32 %v592, %v674
          %v683 = vadd.f32 %v593, %v675
          %v684 = vadd.f32 %v594, %v676
          %v685 = vadd.f32 %v595, %v677
          %v686 = vadd.f32 %v596, %v678
          %v687 = vadd.f32 %v597, %v679
          %v688 = vadd.f32 %v598, %v680
          %v689 = vadd.f32 %v599, %v681
          %s690 = sadd.s32 0, 17
          %s691 = scalar_lea.vmem [#allocation2], %s690
          %v692 = vld [vmem:[%s691] sm:$0xff]
          %v693 = vld [vmem:[%s691 + $0x8] sm:$0xff]
          %v694 = vld [vmem:[%s691 + $0x10] sm:$0xff]
          %v695 = vld [vmem:[%s691 + $0x18] sm:$0xff]
          %v696 = vld [vmem:[%s691 + $0x20] sm:$0xff]
          %v697 = vld [vmem:[%s691 + $0x28] sm:$0xff]
          %v698 = vld [vmem:[%s691 + $0x30] sm:$0xff]
          %v699 = vld [vmem:[%s691 + $0x38] sm:$0xff]
          %v700 = vlaneseq
          %v701 = vshrl.u32 %v700, 7
          %v702 = vsub.s32 0, %v701
          %v703 = vrot.slane %v355, %v702
          %v704 = vmul.f32 %v692, %v703
          %v705 = vmul.f32 %v693, %v703
          %v706 = vmul.f32 %v694, %v703
          %v707 = vmul.f32 %v695, %v703
          %v708 = vmul.f32 %v696, %v703
          %v709 = vmul.f32 %v697, %v703
          %v710 = vmul.f32 %v698, %v703
          %v711 = vmul.f32 %v699, %v703
          %s712 = sadd.s32 0, 25
          %s713 = scalar_lea.vmem [#allocation2], %s712
          %v714 = vld [vmem:[%s713] sm:$0xff]
          %v715 = vld [vmem:[%s713 + $0x8] sm:$0xff]
          %v716 = vld [vmem:[%s713 + $0x10] sm:$0xff]
          %v717 = vld [vmem:[%s713 + $0x18] sm:$0xff]
          %v718 = vld [vmem:[%s713 + $0x20] sm:$0xff]
          %v719 = vld [vmem:[%s713 + $0x28] sm:$0xff]
          %v720 = vld [vmem:[%s713 + $0x30] sm:$0xff]
          %v721 = vld [vmem:[%s713 + $0x38] sm:$0xff]
          %v722 = vlaneseq
          %v723 = vshrl.u32 %v722, 7
          %v724 = vsub.s32 5, %v723
          %v725 = vrot.slane %v355, %v724
          %v726 = vmul.f32 %v714, %v725
          %v727 = vmul.f32 %v715, %v725
          %v728 = vmul.f32 %v716, %v725
          %v729 = vmul.f32 %v717, %v725
          %v730 = vmul.f32 %v718, %v725
          %v731 = vmul.f32 %v719, %v725
          %v732 = vmul.f32 %v720, %v725
          %v733 = vmul.f32 %v721, %v725
          %v734 = vadd.f32 %v704, %v726
          %v735 = vadd.f32 %v705, %v727
          %v736 = vadd.f32 %v706, %v728
          %v737 = vadd.f32 %v707, %v729
          %v738 = vadd.f32 %v708, %v730
          %v739 = vadd.f32 %v709, %v731
          %v740 = vadd.f32 %v710, %v732
          %v741 = vadd.f32 %v711, %v733
          %s742 = sadd.s32 0, 33
          %s743 = scalar_lea.vmem [#allocation2], %s742
          %v744 = vld [vmem:[%s743] sm:$0xff]
          %v745 = vld [vmem:[%s743 + $0x8] sm:$0xff]
          %v746 = vld [vmem:[%s743 + $0x10] sm:$0xff]
          %v747 = vld [vmem:[%s743 + $0x18] sm:$0xff]
          %v748 = vld [vmem:[%s743 + $0x20] sm:$0xff]
          %v749 = vld [vmem:[%s743 + $0x28] sm:$0xff]
          %v750 = vld [vmem:[%s743 + $0x30] sm:$0xff]
          %v751 = vld [vmem:[%s743 + $0x38] sm:$0xff]
          %v752 = vlaneseq
          %v753 = vshrl.u32 %v752, 7
          %v754 = vsub.s32 2, %v753
          %v755 = vrot.slane %v356, %v754
          %v756 = vmul.f32 %v744, %v755
          %v757 = vmul.f32 %v745, %v755
          %v758 = vmul.f32 %v746, %v755
          %v759 = vmul.f32 %v747, %v755
          %v760 = vmul.f32 %v748, %v755
          %v761 = vmul.f32 %v749, %v755
          %v762 = vmul.f32 %v750, %v755
          %v763 = vmul.f32 %v751, %v755
          %v764 = vadd.f32 %v734, %v756
          %v765 = vadd.f32 %v735, %v757
          %v766 = vadd.f32 %v736, %v758
          %v767 = vadd.f32 %v737, %v759
          %v768 = vadd.f32 %v738, %v760
          %v769 = vadd.f32 %v739, %v761
          %v770 = vadd.f32 %v740, %v762
          %v771 = vadd.f32 %v741, %v763
          %v772 = vadd.s32 %v470, 1
          %v773 = vadd.s32 %v471, 1
          %v774 = vadd.s32 %v472, 1
          %v775 = vadd.s32 %v473, 1
          %v776 = vadd.s32 %v474, 1
          %v777 = vadd.s32 %v475, 1
          %v778 = vadd.s32 %v476, 1
          %v779 = vadd.s32 %v477, 1
          %vm780 = vcmp.ge.s32.totalorder %v772, 0
          %vm781 = vcmp.ge.s32.totalorder %v773, 0
          %vm782 = vcmp.ge.s32.totalorder %v774, 0
          %vm783 = vcmp.ge.s32.totalorder %v775, 0
          %vm784 = vcmp.ge.s32.totalorder %v776, 0
          %vm785 = vcmp.ge.s32.totalorder %v777, 0
          %vm786 = vcmp.ge.s32.totalorder %v778, 0
          %vm787 = vcmp.ge.s32.totalorder %v779, 0
          %vm788 = vcmp.lt.s32.totalorder %v772, 8
          %vm789 = vcmp.lt.s32.totalorder %v773, 8
          %vm790 = vcmp.lt.s32.totalorder %v774, 8
          %vm791 = vcmp.lt.s32.totalorder %v775, 8
          %vm792 = vcmp.lt.s32.totalorder %v776, 8
          %vm793 = vcmp.lt.s32.totalorder %v777, 8
          %vm794 = vcmp.lt.s32.totalorder %v778, 8
          %vm795 = vcmp.lt.s32.totalorder %v779, 8
          %vm796 = vmand %vm780, %vm788
          %vm797 = vmand %vm781, %vm789
          %vm798 = vmand %vm782, %vm790
          %vm799 = vmand %vm783, %vm791
          %vm800 = vmand %vm784, %vm792
          %vm801 = vmand %vm785, %vm793
          %vm802 = vmand %vm786, %vm794
          %vm803 = vmand %vm787, %vm795
          %v804 = vsel %vm796, %v764, 0.0
          %v805 = vsel %vm797, %v765, 0.0
          %v806 = vsel %vm798, %v766, 0.0
          %v807 = vsel %vm799, %v767, 0.0
          %v808 = vsel %vm800, %v768, 0.0
          %v809 = vsel %vm801, %v769, 0.0
          %v810 = vsel %vm802, %v770, 0.0
          %v811 = vsel %vm803, %v771, 0.0
          %v812 = vadd.f32 %v682, %v804
          %v813 = vadd.f32 %v683, %v805
          %v814 = vadd.f32 %v684, %v806
          %v815 = vadd.f32 %v685, %v807
          %v816 = vadd.f32 %v686, %v808
          %v817 = vadd.f32 %v687, %v809
          %v818 = vadd.f32 %v688, %v810
          %v819 = vadd.f32 %v689, %v811
          %s820 = sadd.s32 0, 8
          %s821 = scalar_lea.vmem %s281, %s820 [#allocation8]
          %v822 = vld [vmem:[%s821] sm:$0xff]
          %v823 = vld [vmem:[%s821 + $0x8] sm:$0xff]
          %v824 = vld [vmem:[%s821 + $0x10] sm:$0xff]
          %v825 = vld [vmem:[%s821 + $0x18] sm:$0xff]
          %v826 = vld [vmem:[%s821 + $0x20] sm:$0xff]
          %v827 = vld [vmem:[%s821 + $0x28] sm:$0xff]
          %v828 = vld [vmem:[%s821 + $0x30] sm:$0xff]
          %v829 = vld [vmem:[%s821 + $0x38] sm:$0xff]
          %v831 = vlaneseq
          %v832 = vshrl.u32 %v831, 7
          %v833 = vsub.s32 0, %v832
          %v834 = vrot.slane %v358, %v833
          %v836 = vadd.f32 %v812, %v834
          %v837 = vadd.f32 %v813, %v834
          %v838 = vadd.f32 %v814, %v834
          %v839 = vadd.f32 %v815, %v834
          %v840 = vadd.f32 %v816, %v834
          %v841 = vadd.f32 %v817, %v834
          %v842 = vadd.f32 %v818, %v834
          %v843 = vadd.f32 %v819, %v834
          %v844 = vmul.f32 %v822, %v836
          %v845 = vmul.f32 %v823, %v837
          %v846 = vmul.f32 %v824, %v838
          %v847 = vmul.f32 %v825, %v839
          %v848 = vmul.f32 %v826, %v840
          %v849 = vmul.f32 %v827, %v841
          %v850 = vmul.f32 %v828, %v842
          %v851 = vmul.f32 %v829, %v843
          %s852 = scalar_lea.vmem %s327, %s820 [#allocation11]
          %853 = vst [vmem:[%s852] sm:$0xff] %v844
          %854 = vst [vmem:[%s852 + $0x8] sm:$0xff] %v845
          %855 = vst [vmem:[%s852 + $0x10] sm:$0xff] %v846
          %856 = vst [vmem:[%s852 + $0x18] sm:$0xff] %v847
          %857 = vst [vmem:[%s852 + $0x20] sm:$0xff] %v848
          %858 = vst [vmem:[%s852 + $0x28] sm:$0xff] %v849
          %859 = vst [vmem:[%s852 + $0x30] sm:$0xff] %v850
          %860 = vst [vmem:[%s852 + $0x38] sm:$0xff] %v851
        $region52: #{tpu_custom_call.1} parent=35 // pred_fallthru
          _
        %s861 = sld [smem:[#allocation4 + %s34]]
        %p862 = scmp.eq.s32.totalorder %s861, 5
        // Predicated region
        $region53: #{tpu_custom_call.1} parent=35 // pred_check
          %p863 = pneg %p862
        $region54: #{tpu_custom_call.1} parent=35 // pred_check_branch
          %865 = sbr.rel (%p863) target = $region56
        $region55: #{tpu_custom_call.1} parent=35 // pred_region
          %v866 = vlaneseq
          %v867 = vshrl.u32 %v866, 7
          %v868 = vadd.s32 %v867, 8
          %v869 = vadd.s32 %v867, 16
          %v870 = vadd.s32 %v867, 24
          %v871 = vadd.s32 %v867, 32
          %v872 = vadd.s32 %v867, 40
          %v873 = vadd.s32 %v867, 48
          %v874 = vadd.s32 %v867, 56
          %v875 = vstv 0
          %v876 = vadd.s32 %v875, %v867
          %v877 = vadd.s32 %v875, %v868
          %v878 = vadd.s32 %v875, %v869
          %v879 = vadd.s32 %v875, %v870
          %v880 = vadd.s32 %v875, %v871
          %v881 = vadd.s32 %v875, %v872
          %v882 = vadd.s32 %v875, %v873
          %v883 = vadd.s32 %v875, %v874
          %vm884 = vcmp.lt.s32.totalorder %v876, 0
          %v885 = vsub.s32 0, %v876
          %v886 = vsel %vm884, %v885, %v876
          %v887 = vshrl.u32 %v886, 3
          %v888 = vand.u32 %v886, 7
          %v889 = vsub.s32 0, %v888
          %v890 = vsel %vm884, %v889, %v888
          %vm891 = vcmp.lt.s32.totalorder %v877, 0
          %v892 = vsub.s32 0, %v877
          %v893 = vsel %vm891, %v892, %v877
          %v894 = vshrl.u32 %v893, 3
          %v895 = vand.u32 %v893, 7
          %v896 = vsub.s32 0, %v895
          %v897 = vsel %vm891, %v896, %v895
          %vm898 = vcmp.lt.s32.totalorder %v878, 0
          %v899 = vsub.s32 0, %v878
          %v900 = vsel %vm898, %v899, %v878
          %v901 = vshrl.u32 %v900, 3
          %v902 = vand.u32 %v900, 7
          %v903 = vsub.s32 0, %v902
          %v904 = vsel %vm898, %v903, %v902
          %vm905 = vcmp.lt.s32.totalorder %v879, 0
          %v906 = vsub.s32 0, %v879
          %v907 = vsel %vm905, %v906, %v879
          %v908 = vshrl.u32 %v907, 3
          %v909 = vand.u32 %v907, 7
          %v910 = vsub.s32 0, %v909
          %v911 = vsel %vm905, %v910, %v909
          %vm912 = vcmp.lt.s32.totalorder %v880, 0
          %v913 = vsub.s32 0, %v880
          %v914 = vsel %vm912, %v913, %v880
          %v915 = vshrl.u32 %v914, 3
          %v916 = vand.u32 %v914, 7
          %v917 = vsub.s32 0, %v916
          %v918 = vsel %vm912, %v917, %v916
          %vm919 = vcmp.lt.s32.totalorder %v881, 0
          %v920 = vsub.s32 0, %v881
          %v921 = vsel %vm919, %v920, %v881
          %v922 = vshrl.u32 %v921, 3
          %v923 = vand.u32 %v921, 7
          %v924 = vsub.s32 0, %v923
          %v925 = vsel %vm919, %v924, %v923
          %vm926 = vcmp.lt.s32.totalorder %v882, 0
          %v927 = vsub.s32 0, %v882
          %v928 = vsel %vm926, %v927, %v882
          %v929 = vshrl.u32 %v928, 3
          %v930 = vand.u32 %v928, 7
          %v931 = vsub.s32 0, %v930
          %v932 = vsel %vm926, %v931, %v930
          %vm933 = vcmp.lt.s32.totalorder %v883, 0
          %v934 = vsub.s32 0, %v883
          %v935 = vsel %vm933, %v934, %v883
          %v936 = vshrl.u32 %v935, 3
          %v937 = vand.u32 %v935, 7
          %v938 = vsub.s32 0, %v937
          %v939 = vsel %vm933, %v938, %v937
          %vm940 = vcmp.ne.s32.totalorder %v890, 0
          %vm941 = vcmp.ne.s32.totalorder %v897, 0
          %vm942 = vcmp.ne.s32.totalorder %v904, 0
          %vm943 = vcmp.ne.s32.totalorder %v911, 0
          %vm944 = vcmp.ne.s32.totalorder %v918, 0
          %vm945 = vcmp.ne.s32.totalorder %v925, 0
          %vm946 = vcmp.ne.s32.totalorder %v932, 0
          %vm947 = vcmp.ne.s32.totalorder %v939, 0
          %vm948 = vcmp.lt.s32.totalorder %v890, 0
          %vm949 = vcmp.lt.s32.totalorder %v897, 0
          %vm950 = vcmp.lt.s32.totalorder %v904, 0
          %vm951 = vcmp.lt.s32.totalorder %v911, 0
          %vm952 = vcmp.lt.s32.totalorder %v918, 0
          %vm953 = vcmp.lt.s32.totalorder %v925, 0
          %vm954 = vcmp.lt.s32.totalorder %v932, 0
          %vm955 = vcmp.lt.s32.totalorder %v939, 0
          %vm956 = vmand %vm948, %vm940
          %vm957 = vmand %vm949, %vm941
          %vm958 = vmand %vm950, %vm942
          %vm959 = vmand %vm951, %vm943
          %vm960 = vmand %vm952, %vm944
          %vm961 = vmand %vm953, %vm945
          %vm962 = vmand %vm954, %vm946
          %vm963 = vmand %vm955, %vm947
          %v964 = vadd.s32 %v890, 8
          %v965 = vadd.s32 %v897, 8
          %v966 = vadd.s32 %v904, 8
          %v967 = vadd.s32 %v911, 8
          %v968 = vadd.s32 %v918, 8
          %v969 = vadd.s32 %v925, 8
          %v970 = vadd.s32 %v932, 8
          %v971 = vadd.s32 %v939, 8
          %v972 = vsel %vm956, %v964, %v890
          %v973 = vsel %vm957, %v965, %v897
          %v974 = vsel %vm958, %v966, %v904
          %v975 = vsel %vm959, %v967, %v911
          %v976 = vsel %vm960, %v968, %v918
          %v977 = vsel %vm961, %v969, %v925
          %v978 = vsel %vm962, %v970, %v932
          %v979 = vsel %vm963, %v971, %v939
          %s980 = sadd.s32 0, 6
          %s981 = scalar_lea.vmem [#allocation2], %s980
          %v982 = vld [vmem:[%s981] sm:$0xff]
          %v983 = vld [vmem:[%s981 + $0x8] sm:$0xff]
          %v984 = vld [vmem:[%s981 + $0x10] sm:$0xff]
          %v985 = vld [vmem:[%s981 + $0x18] sm:$0xff]
          %v986 = vld [vmem:[%s981 + $0x20] sm:$0xff]
          %v987 = vld [vmem:[%s981 + $0x28] sm:$0xff]
          %v988 = vld [vmem:[%s981 + $0x30] sm:$0xff]
          %v989 = vld [vmem:[%s981 + $0x38] sm:$0xff]
          %v990 = vlaneseq
          %v991 = vshrl.u32 %v990, 7
          %v992 = vsub.s32 0, %v991
          %v993 = vrot.slane %v354, %v992
          %v994 = vmul.f32 %v982, %v993
          %v995 = vmul.f32 %v983, %v993
          %v996 = vmul.f32 %v984, %v993
          %v997 = vmul.f32 %v985, %v993
          %v998 = vmul.f32 %v986, %v993
          %v999 = vmul.f32 %v987, %v993
          %v1000 = vmul.f32 %v988, %v993
          %v1001 = vmul.f32 %v989, %v993
          %s1002 = sadd.s32 0, 14
          %s1003 = scalar_lea.vmem [#allocation2], %s1002
          %v1004 = vld [vmem:[%s1003] sm:$0xff]
          %v1005 = vld [vmem:[%s1003 + $0x8] sm:$0xff]
          %v1006 = vld [vmem:[%s1003 + $0x10] sm:$0xff]
          %v1007 = vld [vmem:[%s1003 + $0x18] sm:$0xff]
          %v1008 = vld [vmem:[%s1003 + $0x20] sm:$0xff]
          %v1009 = vld [vmem:[%s1003 + $0x28] sm:$0xff]
          %v1010 = vld [vmem:[%s1003 + $0x30] sm:$0xff]
          %v1011 = vld [vmem:[%s1003 + $0x38] sm:$0xff]
          %v1012 = vlaneseq
          %v1013 = vshrl.u32 %v1012, 7
          %v1014 = vsub.s32 5, %v1013
          %v1015 = vrot.slane %v354, %v1014
          %v1016 = vmul.f32 %v1004, %v1015
          %v1017 = vmul.f32 %v1005, %v1015
          %v1018 = vmul.f32 %v1006, %v1015
          %v1019 = vmul.f32 %v1007, %v1015
          %v1020 = vmul.f32 %v1008, %v1015
          %v1021 = vmul.f32 %v1009, %v1015
          %v1022 = vmul.f32 %v1010, %v1015
          %v1023 = vmul.f32 %v1011, %v1015
          %v1024 = vadd.f32 %v994, %v1016
          %v1025 = vadd.f32 %v995, %v1017
          %v1026 = vadd.f32 %v996, %v1018
          %v1027 = vadd.f32 %v997, %v1019
          %v1028 = vadd.f32 %v998, %v1020
          %v1029 = vadd.f32 %v999, %v1021
          %v1030 = vadd.f32 %v1000, %v1022
          %v1031 = vadd.f32 %v1001, %v1023
          %s1032 = sadd.s32 0, 22
          %s1033 = scalar_lea.vmem [#allocation2], %s1032
          %v1034 = vld [vmem:[%s1033] sm:$0xff]
          %v1035 = vld [vmem:[%s1033 + $0x8] sm:$0xff]
          %v1036 = vld [vmem:[%s1033 + $0x10] sm:$0xff]
          %v1037 = vld [vmem:[%s1033 + $0x18] sm:$0xff]
          %v1038 = vld [vmem:[%s1033 + $0x20] sm:$0xff]
          %v1039 = vld [vmem:[%s1033 + $0x28] sm:$0xff]
          %v1040 = vld [vmem:[%s1033 + $0x30] sm:$0xff]
          %v1041 = vld [vmem:[%s1033 + $0x38] sm:$0xff]
          %v1042 = vlaneseq
          %v1043 = vshrl.u32 %v1042, 7
          %v1044 = vsub.s32 2, %v1043
          %v1045 = vrot.slane %v355, %v1044
          %v1046 = vmul.f32 %v1034, %v1045
          %v1047 = vmul.f32 %v1035, %v1045
          %v1048 = vmul.f32 %v1036, %v1045
          %v1049 = vmul.f32 %v1037, %v1045
          %v1050 = vmul.f32 %v1038, %v1045
          %v1051 = vmul.f32 %v1039, %v1045
          %v1052 = vmul.f32 %v1040, %v1045
          %v1053 = vmul.f32 %v1041, %v1045
          %v1054 = vadd.f32 %v1024, %v1046
          %v1055 = vadd.f32 %v1025, %v1047
          %v1056 = vadd.f32 %v1026, %v1048
          %v1057 = vadd.f32 %v1027, %v1049
          %v1058 = vadd.f32 %v1028, %v1050
          %v1059 = vadd.f32 %v1029, %v1051
          %v1060 = vadd.f32 %v1030, %v1052
          %v1061 = vadd.f32 %v1031, %v1053
          %s1062 = sadd.s32 0, 30
          %s1063 = scalar_lea.vmem [#allocation2], %s1062
          %v1064 = vld [vmem:[%s1063] sm:$0xff]
          %v1065 = vld [vmem:[%s1063 + $0x8] sm:$0xff]
          %v1066 = vld [vmem:[%s1063 + $0x10] sm:$0xff]
          %v1067 = vld [vmem:[%s1063 + $0x18] sm:$0xff]
          %v1068 = vld [vmem:[%s1063 + $0x20] sm:$0xff]
          %v1069 = vld [vmem:[%s1063 + $0x28] sm:$0xff]
          %v1070 = vld [vmem:[%s1063 + $0x30] sm:$0xff]
          %v1071 = vld [vmem:[%s1063 + $0x38] sm:$0xff]
          %v1072 = vlaneseq
          %v1073 = vshrl.u32 %v1072, 7
          %v1074 = vsub.s32 7, %v1073
          %v1075 = vrot.slane %v355, %v1074
          %v1076 = vmul.f32 %v1064, %v1075
          %v1077 = vmul.f32 %v1065, %v1075
          %v1078 = vmul.f32 %v1066, %v1075
          %v1079 = vmul.f32 %v1067, %v1075
          %v1080 = vmul.f32 %v1068, %v1075
          %v1081 = vmul.f32 %v1069, %v1075
          %v1082 = vmul.f32 %v1070, %v1075
          %v1083 = vmul.f32 %v1071, %v1075
          %v1084 = vadd.f32 %v1054, %v1076
          %v1085 = vadd.f32 %v1055, %v1077
          %v1086 = vadd.f32 %v1056, %v1078
          %v1087 = vadd.f32 %v1057, %v1079
          %v1088 = vadd.f32 %v1058, %v1080
          %v1089 = vadd.f32 %v1059, %v1081
          %v1090 = vadd.f32 %v1060, %v1082
          %v1091 = vadd.f32 %v1061, %v1083
          %s1092 = sadd.s32 0, 38
          %s1093 = scalar_lea.vmem [#allocation2], %s1092
          %v1094 = vld [vmem:[%s1093] sm:$0xff]
          %v1095 = vld [vmem:[%s1093 + $0x8] sm:$0xff]
          %v1096 = vld [vmem:[%s1093 + $0x10] sm:$0xff]
          %v1097 = vld [vmem:[%s1093 + $0x18] sm:$0xff]
          %v1098 = vld [vmem:[%s1093 + $0x20] sm:$0xff]
          %v1099 = vld [vmem:[%s1093 + $0x28] sm:$0xff]
          %v1100 = vld [vmem:[%s1093 + $0x30] sm:$0xff]
          %v1101 = vld [vmem:[%s1093 + $0x38] sm:$0xff]
          %v1102 = vlaneseq
          %v1103 = vshrl.u32 %v1102, 7
          %v1104 = vsub.s32 4, %v1103
          %v1105 = vrot.slane %v356, %v1104
          %v1106 = vmul.f32 %v1094, %v1105
          %v1107 = vmul.f32 %v1095, %v1105
          %v1108 = vmul.f32 %v1096, %v1105
          %v1109 = vmul.f32 %v1097, %v1105
          %v1110 = vmul.f32 %v1098, %v1105
          %v1111 = vmul.f32 %v1099, %v1105
          %v1112 = vmul.f32 %v1100, %v1105
          %v1113 = vmul.f32 %v1101, %v1105
          %v1114 = vadd.f32 %v1084, %v1106
          %v1115 = vadd.f32 %v1085, %v1107
          %v1116 = vadd.f32 %v1086, %v1108
          %v1117 = vadd.f32 %v1087, %v1109
          %v1118 = vadd.f32 %v1088, %v1110
          %v1119 = vadd.f32 %v1089, %v1111
          %v1120 = vadd.f32 %v1090, %v1112
          %v1121 = vadd.f32 %v1091, %v1113
          %v1122 = vadd.s32 %v972, 4294967294
          %v1123 = vadd.s32 %v973, 4294967294
          %v1124 = vadd.s32 %v974, 4294967294
          %v1125 = vadd.s32 %v975, 4294967294
          %v1126 = vadd.s32 %v976, 4294967294
          %v1127 = vadd.s32 %v977, 4294967294
          %v1128 = vadd.s32 %v978, 4294967294
          %v1129 = vadd.s32 %v979, 4294967294
          %vm1130 = vcmp.ge.s32.totalorder %v1122, 0
          %vm1131 = vcmp.ge.s32.totalorder %v1123, 0
          %vm1132 = vcmp.ge.s32.totalorder %v1124, 0
          %vm1133 = vcmp.ge.s32.totalorder %v1125, 0
          %vm1134 = vcmp.ge.s32.totalorder %v1126, 0
          %vm1135 = vcmp.ge.s32.totalorder %v1127, 0
          %vm1136 = vcmp.ge.s32.totalorder %v1128, 0
          %vm1137 = vcmp.ge.s32.totalorder %v1129, 0
          %vm1138 = vcmp.lt.s32.totalorder %v1122, 8
          %vm1139 = vcmp.lt.s32.totalorder %v1123, 8
          %vm1140 = vcmp.lt.s32.totalorder %v1124, 8
          %vm1141 = vcmp.lt.s32.totalorder %v1125, 8
          %vm1142 = vcmp.lt.s32.totalorder %v1126, 8
          %vm1143 = vcmp.lt.s32.totalorder %v1127, 8
          %vm1144 = vcmp.lt.s32.totalorder %v1128, 8
          %vm1145 = vcmp.lt.s32.totalorder %v1129, 8
          %vm1146 = vmand %vm1130, %vm1138
          %vm1147 = vmand %vm1131, %vm1139
          %vm1148 = vmand %vm1132, %vm1140
          %vm1149 = vmand %vm1133, %vm1141
          %vm1150 = vmand %vm1134, %vm1142
          %vm1151 = vmand %vm1135, %vm1143
          %vm1152 = vmand %vm1136, %vm1144
          %vm1153 = vmand %vm1137, %vm1145
          %v1154 = vsel %vm1146, %v1114, 0.0
          %v1155 = vsel %vm1147, %v1115, 0.0
          %v1156 = vsel %vm1148, %v1116, 0.0
          %v1157 = vsel %vm1149, %v1117, 0.0
          %v1158 = vsel %vm1150, %v1118, 0.0
          %v1159 = vsel %vm1151, %v1119, 0.0
          %v1160 = vsel %vm1152, %v1120, 0.0
          %v1161 = vsel %vm1153, %v1121, 0.0
          %s1162 = sadd.s32 0, 7
          %s1163 = scalar_lea.vmem [#allocation2], %s1162
          %v1164 = vld [vmem:[%s1163] sm:$0xff]
          %v1165 = vld [vmem:[%s1163 + $0x8] sm:$0xff]
          %v1166 = vld [vmem:[%s1163 + $0x10] sm:$0xff]
          %v1167 = vld [vmem:[%s1163 + $0x18] sm:$0xff]
          %v1168 = vld [vmem:[%s1163 + $0x20] sm:$0xff]
          %v1169 = vld [vmem:[%s1163 + $0x28] sm:$0xff]
          %v1170 = vld [vmem:[%s1163 + $0x30] sm:$0xff]
          %v1171 = vld [vmem:[%s1163 + $0x38] sm:$0xff]
          %v1172 = vlaneseq
          %v1173 = vshrl.u32 %v1172, 7
          %v1174 = vsub.s32 1, %v1173
          %v1175 = vrot.slane %v354, %v1174
          %v1176 = vmul.f32 %v1164, %v1175
          %v1177 = vmul.f32 %v1165, %v1175
          %v1178 = vmul.f32 %v1166, %v1175
          %v1179 = vmul.f32 %v1167, %v1175
          %v1180 = vmul.f32 %v1168, %v1175
          %v1181 = vmul.f32 %v1169, %v1175
          %v1182 = vmul.f32 %v1170, %v1175
          %v1183 = vmul.f32 %v1171, %v1175
          %s1184 = sadd.s32 0, 15
          %s1185 = scalar_lea.vmem [#allocation2], %s1184
          %v1186 = vld [vmem:[%s1185] sm:$0xff]
          %v1187 = vld [vmem:[%s1185 + $0x8] sm:$0xff]
          %v1188 = vld [vmem:[%s1185 + $0x10] sm:$0xff]
          %v1189 = vld [vmem:[%s1185 + $0x18] sm:$0xff]
          %v1190 = vld [vmem:[%s1185 + $0x20] sm:$0xff]
          %v1191 = vld [vmem:[%s1185 + $0x28] sm:$0xff]
          %v1192 = vld [vmem:[%s1185 + $0x30] sm:$0xff]
          %v1193 = vld [vmem:[%s1185 + $0x38] sm:$0xff]
          %v1194 = vlaneseq
          %v1195 = vshrl.u32 %v1194, 7
          %v1196 = vsub.s32 6, %v1195
          %v1197 = vrot.slane %v354, %v1196
          %v1198 = vmul.f32 %v1186, %v1197
          %v1199 = vmul.f32 %v1187, %v1197
          %v1200 = vmul.f32 %v1188, %v1197
          %v1201 = vmul.f32 %v1189, %v1197
          %v1202 = vmul.f32 %v1190, %v1197
          %v1203 = vmul.f32 %v1191, %v1197
          %v1204 = vmul.f32 %v1192, %v1197
          %v1205 = vmul.f32 %v1193, %v1197
          %v1206 = vadd.f32 %v1176, %v1198
          %v1207 = vadd.f32 %v1177, %v1199
          %v1208 = vadd.f32 %v1178, %v1200
          %v1209 = vadd.f32 %v1179, %v1201
          %v1210 = vadd.f32 %v1180, %v1202
          %v1211 = vadd.f32 %v1181, %v1203
          %v1212 = vadd.f32 %v1182, %v1204
          %v1213 = vadd.f32 %v1183, %v1205
          %s1214 = sadd.s32 0, 23
          %s1215 = scalar_lea.vmem [#allocation2], %s1214
          %v1216 = vld [vmem:[%s1215] sm:$0xff]
          %v1217 = vld [vmem:[%s1215 + $0x8] sm:$0xff]
          %v1218 = vld [vmem:[%s1215 + $0x10] sm:$0xff]
          %v1219 = vld [vmem:[%s1215 + $0x18] sm:$0xff]
          %v1220 = vld [vmem:[%s1215 + $0x20] sm:$0xff]
          %v1221 = vld [vmem:[%s1215 + $0x28] sm:$0xff]
          %v1222 = vld [vmem:[%s1215 + $0x30] sm:$0xff]
          %v1223 = vld [vmem:[%s1215 + $0x38] sm:$0xff]
          %v1224 = vlaneseq
          %v1225 = vshrl.u32 %v1224, 7
          %v1226 = vsub.s32 3, %v1225
          %v1227 = vrot.slane %v355, %v1226
          %v1228 = vmul.f32 %v1216, %v1227
          %v1229 = vmul.f32 %v1217, %v1227
          %v1230 = vmul.f32 %v1218, %v1227
          %v1231 = vmul.f32 %v1219, %v1227
          %v1232 = vmul.f32 %v1220, %v1227
          %v1233 = vmul.f32 %v1221, %v1227
          %v1234 = vmul.f32 %v1222, %v1227
          %v1235 = vmul.f32 %v1223, %v1227
          %v1236 = vadd.f32 %v1206, %v1228
          %v1237 = vadd.f32 %v1207, %v1229
          %v1238 = vadd.f32 %v1208, %v1230
          %v1239 = vadd.f32 %v1209, %v1231
          %v1240 = vadd.f32 %v1210, %v1232
          %v1241 = vadd.f32 %v1211, %v1233
          %v1242 = vadd.f32 %v1212, %v1234
          %v1243 = vadd.f32 %v1213, %v1235
          %s1244 = sadd.s32 0, 31
          %s1245 = scalar_lea.vmem [#allocation2], %s1244
          %v1246 = vld [vmem:[%s1245] sm:$0xff]
          %v1247 = vld [vmem:[%s1245 + $0x8] sm:$0xff]
          %v1248 = vld [vmem:[%s1245 + $0x10] sm:$0xff]
          %v1249 = vld [vmem:[%s1245 + $0x18] sm:$0xff]
          %v1250 = vld [vmem:[%s1245 + $0x20] sm:$0xff]
          %v1251 = vld [vmem:[%s1245 + $0x28] sm:$0xff]
          %v1252 = vld [vmem:[%s1245 + $0x30] sm:$0xff]
          %v1253 = vld [vmem:[%s1245 + $0x38] sm:$0xff]
          %v1254 = vlaneseq
          %v1255 = vshrl.u32 %v1254, 7
          %v1256 = vsub.s32 0, %v1255
          %v1257 = vrot.slane %v356, %v1256
          %v1258 = vmul.f32 %v1246, %v1257
          %v1259 = vmul.f32 %v1247, %v1257
          %v1260 = vmul.f32 %v1248, %v1257
          %v1261 = vmul.f32 %v1249, %v1257
          %v1262 = vmul.f32 %v1250, %v1257
          %v1263 = vmul.f32 %v1251, %v1257
          %v1264 = vmul.f32 %v1252, %v1257
          %v1265 = vmul.f32 %v1253, %v1257
          %v1266 = vadd.f32 %v1236, %v1258
          %v1267 = vadd.f32 %v1237, %v1259
          %v1268 = vadd.f32 %v1238, %v1260
          %v1269 = vadd.f32 %v1239, %v1261
          %v1270 = vadd.f32 %v1240, %v1262
          %v1271 = vadd.f32 %v1241, %v1263
          %v1272 = vadd.f32 %v1242, %v1264
          %v1273 = vadd.f32 %v1243, %v1265
          %s1274 = sadd.s32 0, 39
          %s1275 = scalar_lea.vmem [#allocation2], %s1274
          %v1276 = vld [vmem:[%s1275] sm:$0xff]
          %v1277 = vld [vmem:[%s1275 + $0x8] sm:$0xff]
          %v1278 = vld [vmem:[%s1275 + $0x10] sm:$0xff]
          %v1279 = vld [vmem:[%s1275 + $0x18] sm:$0xff]
          %v1280 = vld [vmem:[%s1275 + $0x20] sm:$0xff]
          %v1281 = vld [vmem:[%s1275 + $0x28] sm:$0xff]
          %v1282 = vld [vmem:[%s1275 + $0x30] sm:$0xff]
          %v1283 = vld [vmem:[%s1275 + $0x38] sm:$0xff]
          %v1284 = vlaneseq
          %v1285 = vshrl.u32 %v1284, 7
          %v1286 = vsub.s32 5, %v1285
          %v1287 = vrot.slane %v356, %v1286
          %v1288 = vmul.f32 %v1276, %v1287
          %v1289 = vmul.f32 %v1277, %v1287
          %v1290 = vmul.f32 %v1278, %v1287
          %v1291 = vmul.f32 %v1279, %v1287
          %v1292 = vmul.f32 %v1280, %v1287
          %v1293 = vmul.f32 %v1281, %v1287
          %v1294 = vmul.f32 %v1282, %v1287
          %v1295 = vmul.f32 %v1283, %v1287
          %v1296 = vadd.f32 %v1266, %v1288
          %v1297 = vadd.f32 %v1267, %v1289
          %v1298 = vadd.f32 %v1268, %v1290
          %v1299 = vadd.f32 %v1269, %v1291
          %v1300 = vadd.f32 %v1270, %v1292
          %v1301 = vadd.f32 %v1271, %v1293
          %v1302 = vadd.f32 %v1272, %v1294
          %v1303 = vadd.f32 %v1273, %v1295
          %v1304 = vadd.s32 %v972, 4294967295
          %v1305 = vadd.s32 %v973, 4294967295
          %v1306 = vadd.s32 %v974, 4294967295
          %v1307 = vadd.s32 %v975, 4294967295
          %v1308 = vadd.s32 %v976, 4294967295
          %v1309 = vadd.s32 %v977, 4294967295
          %v1310 = vadd.s32 %v978, 4294967295
          %v1311 = vadd.s32 %v979, 4294967295
          %vm1312 = vcmp.ge.s32.totalorder %v1304, 0
          %vm1313 = vcmp.ge.s32.totalorder %v1305, 0
          %vm1314 = vcmp.ge.s32.totalorder %v1306, 0
          %vm1315 = vcmp.ge.s32.totalorder %v1307, 0
          %vm1316 = vcmp.ge.s32.totalorder %v1308, 0
          %vm1317 = vcmp.ge.s32.totalorder %v1309, 0
          %vm1318 = vcmp.ge.s32.totalorder %v1310, 0
          %vm1319 = vcmp.ge.s32.totalorder %v1311, 0
          %vm1320 = vcmp.lt.s32.totalorder %v1304, 8
          %vm1321 = vcmp.lt.s32.totalorder %v1305, 8
          %vm1322 = vcmp.lt.s32.totalorder %v1306, 8
          %vm1323 = vcmp.lt.s32.totalorder %v1307, 8
          %vm1324 = vcmp.lt.s32.totalorder %v1308, 8
          %vm1325 = vcmp.lt.s32.totalorder %v1309, 8
          %vm1326 = vcmp.lt.s32.totalorder %v1310, 8
          %vm1327 = vcmp.lt.s32.totalorder %v1311, 8
          %vm1328 = vmand %vm1312, %vm1320
          %vm1329 = vmand %vm1313, %vm1321
          %vm1330 = vmand %vm1314, %vm1322
          %vm1331 = vmand %vm1315, %vm1323
          %vm1332 = vmand %vm1316, %vm1324
          %vm1333 = vmand %vm1317, %vm1325
          %vm1334 = vmand %vm1318, %vm1326
          %vm1335 = vmand %vm1319, %vm1327
          %v1336 = vsel %vm1328, %v1296, 0.0
          %v1337 = vsel %vm1329, %v1297, 0.0
          %v1338 = vsel %vm1330, %v1298, 0.0
          %v1339 = vsel %vm1331, %v1299, 0.0
          %v1340 = vsel %vm1332, %v1300, 0.0
          %v1341 = vsel %vm1333, %v1301, 0.0
          %v1342 = vsel %vm1334, %v1302, 0.0
          %v1343 = vsel %vm1335, %v1303, 0.0
          %v1344 = vadd.f32 %v1154, %v1336
          %v1345 = vadd.f32 %v1155, %v1337
          %v1346 = vadd.f32 %v1156, %v1338
          %v1347 = vadd.f32 %v1157, %v1339
          %v1348 = vadd.f32 %v1158, %v1340
          %v1349 = vadd.f32 %v1159, %v1341
          %v1350 = vadd.f32 %v1160, %v1342
          %v1351 = vadd.f32 %v1161, %v1343
          %s1352 = sadd.s32 0, 8
          %s1353 = scalar_lea.vmem [#allocation2], %s1352
          %v1354 = vld [vmem:[%s1353] sm:$0xff]
          %v1355 = vld [vmem:[%s1353 + $0x8] sm:$0xff]
          %v1356 = vld [vmem:[%s1353 + $0x10] sm:$0xff]
          %v1357 = vld [vmem:[%s1353 + $0x18] sm:$0xff]
          %v1358 = vld [vmem:[%s1353 + $0x20] sm:$0xff]
          %v1359 = vld [vmem:[%s1353 + $0x28] sm:$0xff]
          %v1360 = vld [vmem:[%s1353 + $0x30] sm:$0xff]
          %v1361 = vld [vmem:[%s1353 + $0x38] sm:$0xff]
          %v1362 = vlaneseq
          %v1363 = vshrl.u32 %v1362, 7
          %v1364 = vsub.s32 2, %v1363
          %v1365 = vrot.slane %v354, %v1364
          %v1366 = vmul.f32 %v1354, %v1365
          %v1367 = vmul.f32 %v1355, %v1365
          %v1368 = vmul.f32 %v1356, %v1365
          %v1369 = vmul.f32 %v1357, %v1365
          %v1370 = vmul.f32 %v1358, %v1365
          %v1371 = vmul.f32 %v1359, %v1365
          %v1372 = vmul.f32 %v1360, %v1365
          %v1373 = vmul.f32 %v1361, %v1365
          %s1374 = sadd.s32 0, 16
          %s1375 = scalar_lea.vmem [#allocation2], %s1374
          %v1376 = vld [vmem:[%s1375] sm:$0xff]
          %v1377 = vld [vmem:[%s1375 + $0x8] sm:$0xff]
          %v1378 = vld [vmem:[%s1375 + $0x10] sm:$0xff]
          %v1379 = vld [vmem:[%s1375 + $0x18] sm:$0xff]
          %v1380 = vld [vmem:[%s1375 + $0x20] sm:$0xff]
          %v1381 = vld [vmem:[%s1375 + $0x28] sm:$0xff]
          %v1382 = vld [vmem:[%s1375 + $0x30] sm:$0xff]
          %v1383 = vld [vmem:[%s1375 + $0x38] sm:$0xff]
          %v1384 = vlaneseq
          %v1385 = vshrl.u32 %v1384, 7
          %v1386 = vsub.s32 7, %v1385
          %v1387 = vrot.slane %v354, %v1386
          %v1388 = vmul.f32 %v1376, %v1387
          %v1389 = vmul.f32 %v1377, %v1387
          %v1390 = vmul.f32 %v1378, %v1387
          %v1391 = vmul.f32 %v1379, %v1387
          %v1392 = vmul.f32 %v1380, %v1387
          %v1393 = vmul.f32 %v1381, %v1387
          %v1394 = vmul.f32 %v1382, %v1387
          %v1395 = vmul.f32 %v1383, %v1387
          %v1396 = vadd.f32 %v1366, %v1388
          %v1397 = vadd.f32 %v1367, %v1389
          %v1398 = vadd.f32 %v1368, %v1390
          %v1399 = vadd.f32 %v1369, %v1391
          %v1400 = vadd.f32 %v1370, %v1392
          %v1401 = vadd.f32 %v1371, %v1393
          %v1402 = vadd.f32 %v1372, %v1394
          %v1403 = vadd.f32 %v1373, %v1395
          %s1404 = sadd.s32 0, 24
          %s1405 = scalar_lea.vmem [#allocation2], %s1404
          %v1406 = vld [vmem:[%s1405] sm:$0xff]
          %v1407 = vld [vmem:[%s1405 + $0x8] sm:$0xff]
          %v1408 = vld [vmem:[%s1405 + $0x10] sm:$0xff]
          %v1409 = vld [vmem:[%s1405 + $0x18] sm:$0xff]
          %v1410 = vld [vmem:[%s1405 + $0x20] sm:$0xff]
          %v1411 = vld [vmem:[%s1405 + $0x28] sm:$0xff]
          %v1412 = vld [vmem:[%s1405 + $0x30] sm:$0xff]
          %v1413 = vld [vmem:[%s1405 + $0x38] sm:$0xff]
          %v1414 = vlaneseq
          %v1415 = vshrl.u32 %v1414, 7
          %v1416 = vsub.s32 4, %v1415
          %v1417 = vrot.slane %v355, %v1416
          %v1418 = vmul.f32 %v1406, %v1417
          %v1419 = vmul.f32 %v1407, %v1417
          %v1420 = vmul.f32 %v1408, %v1417
          %v1421 = vmul.f32 %v1409, %v1417
          %v1422 = vmul.f32 %v1410, %v1417
          %v1423 = vmul.f32 %v1411, %v1417
          %v1424 = vmul.f32 %v1412, %v1417
          %v1425 = vmul.f32 %v1413, %v1417
          %v1426 = vadd.f32 %v1396, %v1418
          %v1427 = vadd.f32 %v1397, %v1419
          %v1428 = vadd.f32 %v1398, %v1420
          %v1429 = vadd.f32 %v1399, %v1421
          %v1430 = vadd.f32 %v1400, %v1422
          %v1431 = vadd.f32 %v1401, %v1423
          %v1432 = vadd.f32 %v1402, %v1424
          %v1433 = vadd.f32 %v1403, %v1425
          %s1434 = sadd.s32 0, 32
          %s1435 = scalar_lea.vmem [#allocation2], %s1434
          %v1436 = vld [vmem:[%s1435] sm:$0xff]
          %v1437 = vld [vmem:[%s1435 + $0x8] sm:$0xff]
          %v1438 = vld [vmem:[%s1435 + $0x10] sm:$0xff]
          %v1439 = vld [vmem:[%s1435 + $0x18] sm:$0xff]
          %v1440 = vld [vmem:[%s1435 + $0x20] sm:$0xff]
          %v1441 = vld [vmem:[%s1435 + $0x28] sm:$0xff]
          %v1442 = vld [vmem:[%s1435 + $0x30] sm:$0xff]
          %v1443 = vld [vmem:[%s1435 + $0x38] sm:$0xff]
          %v1444 = vlaneseq
          %v1445 = vshrl.u32 %v1444, 7
          %v1446 = vsub.s32 1, %v1445
          %v1447 = vrot.slane %v356, %v1446
          %v1448 = vmul.f32 %v1436, %v1447
          %v1449 = vmul.f32 %v1437, %v1447
          %v1450 = vmul.f32 %v1438, %v1447
          %v1451 = vmul.f32 %v1439, %v1447
          %v1452 = vmul.f32 %v1440, %v1447
          %v1453 = vmul.f32 %v1441, %v1447
          %v1454 = vmul.f32 %v1442, %v1447
          %v1455 = vmul.f32 %v1443, %v1447
          %v1456 = vadd.f32 %v1426, %v1448
          %v1457 = vadd.f32 %v1427, %v1449
          %v1458 = vadd.f32 %v1428, %v1450
          %v1459 = vadd.f32 %v1429, %v1451
          %v1460 = vadd.f32 %v1430, %v1452
          %v1461 = vadd.f32 %v1431, %v1453
          %v1462 = vadd.f32 %v1432, %v1454
          %v1463 = vadd.f32 %v1433, %v1455
          %s1464 = sadd.s32 0, 40
          %s1465 = scalar_lea.vmem [#allocation2], %s1464
          %v1466 = vld [vmem:[%s1465] sm:$0xff]
          %v1467 = vld [vmem:[%s1465 + $0x8] sm:$0xff]
          %v1468 = vld [vmem:[%s1465 + $0x10] sm:$0xff]
          %v1469 = vld [vmem:[%s1465 + $0x18] sm:$0xff]
          %v1470 = vld [vmem:[%s1465 + $0x20] sm:$0xff]
          %v1471 = vld [vmem:[%s1465 + $0x28] sm:$0xff]
          %v1472 = vld [vmem:[%s1465 + $0x30] sm:$0xff]
          %v1473 = vld [vmem:[%s1465 + $0x38] sm:$0xff]
          %v1474 = vlaneseq
          %v1475 = vshrl.u32 %v1474, 7
          %v1476 = vsub.s32 6, %v1475
          %v1477 = vrot.slane %v356, %v1476
          %v1478 = vmul.f32 %v1466, %v1477
          %v1479 = vmul.f32 %v1467, %v1477
          %v1480 = vmul.f32 %v1468, %v1477
          %v1481 = vmul.f32 %v1469, %v1477
          %v1482 = vmul.f32 %v1470, %v1477
          %v1483 = vmul.f32 %v1471, %v1477
          %v1484 = vmul.f32 %v1472, %v1477
          %v1485 = vmul.f32 %v1473, %v1477
          %v1486 = vadd.f32 %v1456, %v1478
          %v1487 = vadd.f32 %v1457, %v1479
          %v1488 = vadd.f32 %v1458, %v1480
          %v1489 = vadd.f32 %v1459, %v1481
          %v1490 = vadd.f32 %v1460, %v1482
          %v1491 = vadd.f32 %v1461, %v1483
          %v1492 = vadd.f32 %v1462, %v1484
          %v1493 = vadd.f32 %v1463, %v1485
          %v1494 = vadd.f32 %v1344, %v1486
          %v1495 = vadd.f32 %v1345, %v1487
          %v1496 = vadd.f32 %v1346, %v1488
          %v1497 = vadd.f32 %v1347, %v1489
          %v1498 = vadd.f32 %v1348, %v1490
          %v1499 = vadd.f32 %v1349, %v1491
          %v1500 = vadd.f32 %v1350, %v1492
          %v1501 = vadd.f32 %v1351, %v1493
          %s1502 = sadd.s32 0, 9
          %s1503 = scalar_lea.vmem [#allocation2], %s1502
          %v1504 = vld [vmem:[%s1503] sm:$0xff]
          %v1505 = vld [vmem:[%s1503 + $0x8] sm:$0xff]
          %v1506 = vld [vmem:[%s1503 + $0x10] sm:$0xff]
          %v1507 = vld [vmem:[%s1503 + $0x18] sm:$0xff]
          %v1508 = vld [vmem:[%s1503 + $0x20] sm:$0xff]
          %v1509 = vld [vmem:[%s1503 + $0x28] sm:$0xff]
          %v1510 = vld [vmem:[%s1503 + $0x30] sm:$0xff]
          %v1511 = vld [vmem:[%s1503 + $0x38] sm:$0xff]
          %v1512 = vlaneseq
          %v1513 = vshrl.u32 %v1512, 7
          %v1514 = vsub.s32 3, %v1513
          %v1515 = vrot.slane %v354, %v1514
          %v1516 = vmul.f32 %v1504, %v1515
          %v1517 = vmul.f32 %v1505, %v1515
          %v1518 = vmul.f32 %v1506, %v1515
          %v1519 = vmul.f32 %v1507, %v1515
          %v1520 = vmul.f32 %v1508, %v1515
          %v1521 = vmul.f32 %v1509, %v1515
          %v1522 = vmul.f32 %v1510, %v1515
          %v1523 = vmul.f32 %v1511, %v1515
          %s1524 = sadd.s32 0, 17
          %s1525 = scalar_lea.vmem [#allocation2], %s1524
          %v1526 = vld [vmem:[%s1525] sm:$0xff]
          %v1527 = vld [vmem:[%s1525 + $0x8] sm:$0xff]
          %v1528 = vld [vmem:[%s1525 + $0x10] sm:$0xff]
          %v1529 = vld [vmem:[%s1525 + $0x18] sm:$0xff]
          %v1530 = vld [vmem:[%s1525 + $0x20] sm:$0xff]
          %v1531 = vld [vmem:[%s1525 + $0x28] sm:$0xff]
          %v1532 = vld [vmem:[%s1525 + $0x30] sm:$0xff]
          %v1533 = vld [vmem:[%s1525 + $0x38] sm:$0xff]
          %v1534 = vlaneseq
          %v1535 = vshrl.u32 %v1534, 7
          %v1536 = vsub.s32 0, %v1535
          %v1537 = vrot.slane %v355, %v1536
          %v1538 = vmul.f32 %v1526, %v1537
          %v1539 = vmul.f32 %v1527, %v1537
          %v1540 = vmul.f32 %v1528, %v1537
          %v1541 = vmul.f32 %v1529, %v1537
          %v1542 = vmul.f32 %v1530, %v1537
          %v1543 = vmul.f32 %v1531, %v1537
          %v1544 = vmul.f32 %v1532, %v1537
          %v1545 = vmul.f32 %v1533, %v1537
          %v1546 = vadd.f32 %v1516, %v1538
          %v1547 = vadd.f32 %v1517, %v1539
          %v1548 = vadd.f32 %v1518, %v1540
          %v1549 = vadd.f32 %v1519, %v1541
          %v1550 = vadd.f32 %v1520, %v1542
          %v1551 = vadd.f32 %v1521, %v1543
          %v1552 = vadd.f32 %v1522, %v1544
          %v1553 = vadd.f32 %v1523, %v1545
          %s1554 = sadd.s32 0, 25
          %s1555 = scalar_lea.vmem [#allocation2], %s1554
          %v1556 = vld [vmem:[%s1555] sm:$0xff]
          %v1557 = vld [vmem:[%s1555 + $0x8] sm:$0xff]
          %v1558 = vld [vmem:[%s1555 + $0x10] sm:$0xff]
          %v1559 = vld [vmem:[%s1555 + $0x18] sm:$0xff]
          %v1560 = vld [vmem:[%s1555 + $0x20] sm:$0xff]
          %v1561 = vld [vmem:[%s1555 + $0x28] sm:$0xff]
          %v1562 = vld [vmem:[%s1555 + $0x30] sm:$0xff]
          %v1563 = vld [vmem:[%s1555 + $0x38] sm:$0xff]
          %v1564 = vlaneseq
          %v1565 = vshrl.u32 %v1564, 7
          %v1566 = vsub.s32 5, %v1565
          %v1567 = vrot.slane %v355, %v1566
          %v1568 = vmul.f32 %v1556, %v1567
          %v1569 = vmul.f32 %v1557, %v1567
          %v1570 = vmul.f32 %v1558, %v1567
          %v1571 = vmul.f32 %v1559, %v1567
          %v1572 = vmul.f32 %v1560, %v1567
          %v1573 = vmul.f32 %v1561, %v1567
          %v1574 = vmul.f32 %v1562, %v1567
          %v1575 = vmul.f32 %v1563, %v1567
          %v1576 = vadd.f32 %v1546, %v1568
          %v1577 = vadd.f32 %v1547, %v1569
          %v1578 = vadd.f32 %v1548, %v1570
          %v1579 = vadd.f32 %v1549, %v1571
          %v1580 = vadd.f32 %v1550, %v1572
          %v1581 = vadd.f32 %v1551, %v1573
          %v1582 = vadd.f32 %v1552, %v1574
          %v1583 = vadd.f32 %v1553, %v1575
          %s1584 = sadd.s32 0, 33
          %s1585 = scalar_lea.vmem [#allocation2], %s1584
          %v1586 = vld [vmem:[%s1585] sm:$0xff]
          %v1587 = vld [vmem:[%s1585 + $0x8] sm:$0xff]
          %v1588 = vld [vmem:[%s1585 + $0x10] sm:$0xff]
          %v1589 = vld [vmem:[%s1585 + $0x18] sm:$0xff]
          %v1590 = vld [vmem:[%s1585 + $0x20] sm:$0xff]
          %v1591 = vld [vmem:[%s1585 + $0x28] sm:$0xff]
          %v1592 = vld [vmem:[%s1585 + $0x30] sm:$0xff]
          %v1593 = vld [vmem:[%s1585 + $0x38] sm:$0xff]
          %v1594 = vlaneseq
          %v1595 = vshrl.u32 %v1594, 7
          %v1596 = vsub.s32 2, %v1595
          %v1597 = vrot.slane %v356, %v1596
          %v1598 = vmul.f32 %v1586, %v1597
          %v1599 = vmul.f32 %v1587, %v1597
          %v1600 = vmul.f32 %v1588, %v1597
          %v1601 = vmul.f32 %v1589, %v1597
          %v1602 = vmul.f32 %v1590, %v1597
          %v1603 = vmul.f32 %v1591, %v1597
          %v1604 = vmul.f32 %v1592, %v1597
          %v1605 = vmul.f32 %v1593, %v1597
          %v1606 = vadd.f32 %v1576, %v1598
          %v1607 = vadd.f32 %v1577, %v1599
          %v1608 = vadd.f32 %v1578, %v1600
          %v1609 = vadd.f32 %v1579, %v1601
          %v1610 = vadd.f32 %v1580, %v1602
          %v1611 = vadd.f32 %v1581, %v1603
          %v1612 = vadd.f32 %v1582, %v1604
          %v1613 = vadd.f32 %v1583, %v1605
          %s1614 = sadd.s32 0, 41
          %s1615 = scalar_lea.vmem [#allocation2], %s1614
          %v1616 = vld [vmem:[%s1615] sm:$0xff]
          %v1617 = vld [vmem:[%s1615 + $0x8] sm:$0xff]
          %v1618 = vld [vmem:[%s1615 + $0x10] sm:$0xff]
          %v1619 = vld [vmem:[%s1615 + $0x18] sm:$0xff]
          %v1620 = vld [vmem:[%s1615 + $0x20] sm:$0xff]
          %v1621 = vld [vmem:[%s1615 + $0x28] sm:$0xff]
          %v1622 = vld [vmem:[%s1615 + $0x30] sm:$0xff]
          %v1623 = vld [vmem:[%s1615 + $0x38] sm:$0xff]
          %v1624 = vlaneseq
          %v1625 = vshrl.u32 %v1624, 7
          %v1626 = vsub.s32 7, %v1625
          %v1627 = vrot.slane %v356, %v1626
          %v1628 = vmul.f32 %v1616, %v1627
          %v1629 = vmul.f32 %v1617, %v1627
          %v1630 = vmul.f32 %v1618, %v1627
          %v1631 = vmul.f32 %v1619, %v1627
          %v1632 = vmul.f32 %v1620, %v1627
          %v1633 = vmul.f32 %v1621, %v1627
          %v1634 = vmul.f32 %v1622, %v1627
          %v1635 = vmul.f32 %v1623, %v1627
          %v1636 = vadd.f32 %v1606, %v1628
          %v1637 = vadd.f32 %v1607, %v1629
          %v1638 = vadd.f32 %v1608, %v1630
          %v1639 = vadd.f32 %v1609, %v1631
          %v1640 = vadd.f32 %v1610, %v1632
          %v1641 = vadd.f32 %v1611, %v1633
          %v1642 = vadd.f32 %v1612, %v1634
          %v1643 = vadd.f32 %v1613, %v1635
          %v1644 = vadd.s32 %v972, 1
          %v1645 = vadd.s32 %v973, 1
          %v1646 = vadd.s32 %v974, 1
          %v1647 = vadd.s32 %v975, 1
          %v1648 = vadd.s32 %v976, 1
          %v1649 = vadd.s32 %v977, 1
          %v1650 = vadd.s32 %v978, 1
          %v1651 = vadd.s32 %v979, 1
          %vm1652 = vcmp.ge.s32.totalorder %v1644, 0
          %vm1653 = vcmp.ge.s32.totalorder %v1645, 0
          %vm1654 = vcmp.ge.s32.totalorder %v1646, 0
          %vm1655 = vcmp.ge.s32.totalorder %v1647, 0
          %vm1656 = vcmp.ge.s32.totalorder %v1648, 0
          %vm1657 = vcmp.ge.s32.totalorder %v1649, 0
          %vm1658 = vcmp.ge.s32.totalorder %v1650, 0
          %vm1659 = vcmp.ge.s32.totalorder %v1651, 0
          %vm1660 = vcmp.lt.s32.totalorder %v1644, 8
          %vm1661 = vcmp.lt.s32.totalorder %v1645, 8
          %vm1662 = vcmp.lt.s32.totalorder %v1646, 8
          %vm1663 = vcmp.lt.s32.totalorder %v1647, 8
          %vm1664 = vcmp.lt.s32.totalorder %v1648, 8
          %vm1665 = vcmp.lt.s32.totalorder %v1649, 8
          %vm1666 = vcmp.lt.s32.totalorder %v1650, 8
          %vm1667 = vcmp.lt.s32.totalorder %v1651, 8
          %vm1668 = vmand %vm1652, %vm1660
          %vm1669 = vmand %vm1653, %vm1661
          %vm1670 = vmand %vm1654, %vm1662
          %vm1671 = vmand %vm1655, %vm1663
          %vm1672 = vmand %vm1656, %vm1664
          %vm1673 = vmand %vm1657, %vm1665
          %vm1674 = vmand %vm1658, %vm1666
          %vm1675 = vmand %vm1659, %vm1667
          %v1676 = vsel %vm1668, %v1636, 0.0
          %v1677 = vsel %vm1669, %v1637, 0.0
          %v1678 = vsel %vm1670, %v1638, 0.0
          %v1679 = vsel %vm1671, %v1639, 0.0
          %v1680 = vsel %vm1672, %v1640, 0.0
          %v1681 = vsel %vm1673, %v1641, 0.0
          %v1682 = vsel %vm1674, %v1642, 0.0
          %v1683 = vsel %vm1675, %v1643, 0.0
          %v1684 = vadd.f32 %v1494, %v1676
          %v1685 = vadd.f32 %v1495, %v1677
          %v1686 = vadd.f32 %v1496, %v1678
          %v1687 = vadd.f32 %v1497, %v1679
          %v1688 = vadd.f32 %v1498, %v1680
          %v1689 = vadd.f32 %v1499, %v1681
          %v1690 = vadd.f32 %v1500, %v1682
          %v1691 = vadd.f32 %v1501, %v1683
          %s1692 = sadd.s32 0, 10
          %s1693 = scalar_lea.vmem [#allocation2], %s1692
          %v1694 = vld [vmem:[%s1693] sm:$0xff]
          %v1695 = vld [vmem:[%s1693 + $0x8] sm:$0xff]
          %v1696 = vld [vmem:[%s1693 + $0x10] sm:$0xff]
          %v1697 = vld [vmem:[%s1693 + $0x18] sm:$0xff]
          %v1698 = vld [vmem:[%s1693 + $0x20] sm:$0xff]
          %v1699 = vld [vmem:[%s1693 + $0x28] sm:$0xff]
          %v1700 = vld [vmem:[%s1693 + $0x30] sm:$0xff]
          %v1701 = vld [vmem:[%s1693 + $0x38] sm:$0xff]
          %v1702 = vlaneseq
          %v1703 = vshrl.u32 %v1702, 7
          %v1704 = vsub.s32 4, %v1703
          %v1705 = vrot.slane %v354, %v1704
          %v1706 = vmul.f32 %v1694, %v1705
          %v1707 = vmul.f32 %v1695, %v1705
          %v1708 = vmul.f32 %v1696, %v1705
          %v1709 = vmul.f32 %v1697, %v1705
          %v1710 = vmul.f32 %v1698, %v1705
          %v1711 = vmul.f32 %v1699, %v1705
          %v1712 = vmul.f32 %v1700, %v1705
          %v1713 = vmul.f32 %v1701, %v1705
          %s1714 = sadd.s32 0, 18
          %s1715 = scalar_lea.vmem [#allocation2], %s1714
          %v1716 = vld [vmem:[%s1715] sm:$0xff]
          %v1717 = vld [vmem:[%s1715 + $0x8] sm:$0xff]
          %v1718 = vld [vmem:[%s1715 + $0x10] sm:$0xff]
          %v1719 = vld [vmem:[%s1715 + $0x18] sm:$0xff]
          %v1720 = vld [vmem:[%s1715 + $0x20] sm:$0xff]
          %v1721 = vld [vmem:[%s1715 + $0x28] sm:$0xff]
          %v1722 = vld [vmem:[%s1715 + $0x30] sm:$0xff]
          %v1723 = vld [vmem:[%s1715 + $0x38] sm:$0xff]
          %v1724 = vlaneseq
          %v1725 = vshrl.u32 %v1724, 7
          %v1726 = vsub.s32 1, %v1725
          %v1727 = vrot.slane %v355, %v1726
          %v1728 = vmul.f32 %v1716, %v1727
          %v1729 = vmul.f32 %v1717, %v1727
          %v1730 = vmul.f32 %v1718, %v1727
          %v1731 = vmul.f32 %v1719, %v1727
          %v1732 = vmul.f32 %v1720, %v1727
          %v1733 = vmul.f32 %v1721, %v1727
          %v1734 = vmul.f32 %v1722, %v1727
          %v1735 = vmul.f32 %v1723, %v1727
          %v1736 = vadd.f32 %v1706, %v1728
          %v1737 = vadd.f32 %v1707, %v1729
          %v1738 = vadd.f32 %v1708, %v1730
          %v1739 = vadd.f32 %v1709, %v1731
          %v1740 = vadd.f32 %v1710, %v1732
          %v1741 = vadd.f32 %v1711, %v1733
          %v1742 = vadd.f32 %v1712, %v1734
          %v1743 = vadd.f32 %v1713, %v1735
          %s1744 = sadd.s32 0, 26
          %s1745 = scalar_lea.vmem [#allocation2], %s1744
          %v1746 = vld [vmem:[%s1745] sm:$0xff]
          %v1747 = vld [vmem:[%s1745 + $0x8] sm:$0xff]
          %v1748 = vld [vmem:[%s1745 + $0x10] sm:$0xff]
          %v1749 = vld [vmem:[%s1745 + $0x18] sm:$0xff]
          %v1750 = vld [vmem:[%s1745 + $0x20] sm:$0xff]
          %v1751 = vld [vmem:[%s1745 + $0x28] sm:$0xff]
          %v1752 = vld [vmem:[%s1745 + $0x30] sm:$0xff]
          %v1753 = vld [vmem:[%s1745 + $0x38] sm:$0xff]
          %v1754 = vlaneseq
          %v1755 = vshrl.u32 %v1754, 7
          %v1756 = vsub.s32 6, %v1755
          %v1757 = vrot.slane %v355, %v1756
          %v1758 = vmul.f32 %v1746, %v1757
          %v1759 = vmul.f32 %v1747, %v1757
          %v1760 = vmul.f32 %v1748, %v1757
          %v1761 = vmul.f32 %v1749, %v1757
          %v1762 = vmul.f32 %v1750, %v1757
          %v1763 = vmul.f32 %v1751, %v1757
          %v1764 = vmul.f32 %v1752, %v1757
          %v1765 = vmul.f32 %v1753, %v1757
          %v1766 = vadd.f32 %v1736, %v1758
          %v1767 = vadd.f32 %v1737, %v1759
          %v1768 = vadd.f32 %v1738, %v1760
          %v1769 = vadd.f32 %v1739, %v1761
          %v1770 = vadd.f32 %v1740, %v1762
          %v1771 = vadd.f32 %v1741, %v1763
          %v1772 = vadd.f32 %v1742, %v1764
          %v1773 = vadd.f32 %v1743, %v1765
          %s1774 = sadd.s32 0, 34
          %s1775 = scalar_lea.vmem [#allocation2], %s1774
          %v1776 = vld [vmem:[%s1775] sm:$0xff]
          %v1777 = vld [vmem:[%s1775 + $0x8] sm:$0xff]
          %v1778 = vld [vmem:[%s1775 + $0x10] sm:$0xff]
          %v1779 = vld [vmem:[%s1775 + $0x18] sm:$0xff]
          %v1780 = vld [vmem:[%s1775 + $0x20] sm:$0xff]
          %v1781 = vld [vmem:[%s1775 + $0x28] sm:$0xff]
          %v1782 = vld [vmem:[%s1775 + $0x30] sm:$0xff]
          %v1783 = vld [vmem:[%s1775 + $0x38] sm:$0xff]
          %v1784 = vlaneseq
          %v1785 = vshrl.u32 %v1784, 7
          %v1786 = vsub.s32 3, %v1785
          %v1787 = vrot.slane %v356, %v1786
          %v1788 = vmul.f32 %v1776, %v1787
          %v1789 = vmul.f32 %v1777, %v1787
          %v1790 = vmul.f32 %v1778, %v1787
          %v1791 = vmul.f32 %v1779, %v1787
          %v1792 = vmul.f32 %v1780, %v1787
          %v1793 = vmul.f32 %v1781, %v1787
          %v1794 = vmul.f32 %v1782, %v1787
          %v1795 = vmul.f32 %v1783, %v1787
          %v1796 = vadd.f32 %v1766, %v1788
          %v1797 = vadd.f32 %v1767, %v1789
          %v1798 = vadd.f32 %v1768, %v1790
          %v1799 = vadd.f32 %v1769, %v1791
          %v1800 = vadd.f32 %v1770, %v1792
          %v1801 = vadd.f32 %v1771, %v1793
          %v1802 = vadd.f32 %v1772, %v1794
          %v1803 = vadd.f32 %v1773, %v1795
          %s1804 = sadd.s32 0, 42
          %s1805 = scalar_lea.vmem [#allocation2], %s1804
          %v1806 = vld [vmem:[%s1805] sm:$0xff]
          %v1807 = vld [vmem:[%s1805 + $0x8] sm:$0xff]
          %v1808 = vld [vmem:[%s1805 + $0x10] sm:$0xff]
          %v1809 = vld [vmem:[%s1805 + $0x18] sm:$0xff]
          %v1810 = vld [vmem:[%s1805 + $0x20] sm:$0xff]
          %v1811 = vld [vmem:[%s1805 + $0x28] sm:$0xff]
          %v1812 = vld [vmem:[%s1805 + $0x30] sm:$0xff]
          %v1813 = vld [vmem:[%s1805 + $0x38] sm:$0xff]
          %v1814 = vlaneseq
          %v1815 = vshrl.u32 %v1814, 7
          %v1816 = vsub.s32 0, %v1815
          %v1817 = vrot.slane %v357, %v1816
          %v1818 = vmul.f32 %v1806, %v1817
          %v1819 = vmul.f32 %v1807, %v1817
          %v1820 = vmul.f32 %v1808, %v1817
          %v1821 = vmul.f32 %v1809, %v1817
          %v1822 = vmul.f32 %v1810, %v1817
          %v1823 = vmul.f32 %v1811, %v1817
          %v1824 = vmul.f32 %v1812, %v1817
          %v1825 = vmul.f32 %v1813, %v1817
          %v1826 = vadd.f32 %v1796, %v1818
          %v1827 = vadd.f32 %v1797, %v1819
          %v1828 = vadd.f32 %v1798, %v1820
          %v1829 = vadd.f32 %v1799, %v1821
          %v1830 = vadd.f32 %v1800, %v1822
          %v1831 = vadd.f32 %v1801, %v1823
          %v1832 = vadd.f32 %v1802, %v1824
          %v1833 = vadd.f32 %v1803, %v1825
          %v1834 = vadd.s32 %v972, 2
          %v1835 = vadd.s32 %v973, 2
          %v1836 = vadd.s32 %v974, 2
          %v1837 = vadd.s32 %v975, 2
          %v1838 = vadd.s32 %v976, 2
          %v1839 = vadd.s32 %v977, 2
          %v1840 = vadd.s32 %v978, 2
          %v1841 = vadd.s32 %v979, 2
          %vm1842 = vcmp.ge.s32.totalorder %v1834, 0
          %vm1843 = vcmp.ge.s32.totalorder %v1835, 0
          %vm1844 = vcmp.ge.s32.totalorder %v1836, 0
          %vm1845 = vcmp.ge.s32.totalorder %v1837, 0
          %vm1846 = vcmp.ge.s32.totalorder %v1838, 0
          %vm1847 = vcmp.ge.s32.totalorder %v1839, 0
          %vm1848 = vcmp.ge.s32.totalorder %v1840, 0
          %vm1849 = vcmp.ge.s32.totalorder %v1841, 0
          %vm1850 = vcmp.lt.s32.totalorder %v1834, 8
          %vm1851 = vcmp.lt.s32.totalorder %v1835, 8
          %vm1852 = vcmp.lt.s32.totalorder %v1836, 8
          %vm1853 = vcmp.lt.s32.totalorder %v1837, 8
          %vm1854 = vcmp.lt.s32.totalorder %v1838, 8
          %vm1855 = vcmp.lt.s32.totalorder %v1839, 8
          %vm1856 = vcmp.lt.s32.totalorder %v1840, 8
          %vm1857 = vcmp.lt.s32.totalorder %v1841, 8
          %vm1858 = vmand %vm1842, %vm1850
          %vm1859 = vmand %vm1843, %vm1851
          %vm1860 = vmand %vm1844, %vm1852
          %vm1861 = vmand %vm1845, %vm1853
          %vm1862 = vmand %vm1846, %vm1854
          %vm1863 = vmand %vm1847, %vm1855
          %vm1864 = vmand %vm1848, %vm1856
          %vm1865 = vmand %vm1849, %vm1857
          %v1866 = vsel %vm1858, %v1826, 0.0
          %v1867 = vsel %vm1859, %v1827, 0.0
          %v1868 = vsel %vm1860, %v1828, 0.0
          %v1869 = vsel %vm1861, %v1829, 0.0
          %v1870 = vsel %vm1862, %v1830, 0.0
          %v1871 = vsel %vm1863, %v1831, 0.0
          %v1872 = vsel %vm1864, %v1832, 0.0
          %v1873 = vsel %vm1865, %v1833, 0.0
          %v1874 = vadd.f32 %v1684, %v1866
          %v1875 = vadd.f32 %v1685, %v1867
          %v1876 = vadd.f32 %v1686, %v1868
          %v1877 = vadd.f32 %v1687, %v1869
          %v1878 = vadd.f32 %v1688, %v1870
          %v1879 = vadd.f32 %v1689, %v1871
          %v1880 = vadd.f32 %v1690, %v1872
          %v1881 = vadd.f32 %v1691, %v1873
          %s1882 = scalar_lea.vmem %s281, %s1352 [#allocation8]
          %v1883 = vld [vmem:[%s1882] sm:$0xff]
          %v1884 = vld [vmem:[%s1882 + $0x8] sm:$0xff]
          %v1885 = vld [vmem:[%s1882 + $0x10] sm:$0xff]
          %v1886 = vld [vmem:[%s1882 + $0x18] sm:$0xff]
          %v1887 = vld [vmem:[%s1882 + $0x20] sm:$0xff]
          %v1888 = vld [vmem:[%s1882 + $0x28] sm:$0xff]
          %v1889 = vld [vmem:[%s1882 + $0x30] sm:$0xff]
          %v1890 = vld [vmem:[%s1882 + $0x38] sm:$0xff]
          %v1892 = vlaneseq
          %v1893 = vshrl.u32 %v1892, 7
          %v1894 = vsub.s32 0, %v1893
          %v1895 = vrot.slane %v358, %v1894
          %v1897 = vadd.f32 %v1874, %v1895
          %v1898 = vadd.f32 %v1875, %v1895
          %v1899 = vadd.f32 %v1876, %v1895
          %v1900 = vadd.f32 %v1877, %v1895
          %v1901 = vadd.f32 %v1878, %v1895
          %v1902 = vadd.f32 %v1879, %v1895
          %v1903 = vadd.f32 %v1880, %v1895
          %v1904 = vadd.f32 %v1881, %v1895
          %v1905 = vmul.f32 %v1883, %v1897
          %v1906 = vmul.f32 %v1884, %v1898
          %v1907 = vmul.f32 %v1885, %v1899
          %v1908 = vmul.f32 %v1886, %v1900
          %v1909 = vmul.f32 %v1887, %v1901
          %v1910 = vmul.f32 %v1888, %v1902
          %v1911 = vmul.f32 %v1889, %v1903
          %v1912 = vmul.f32 %v1890, %v1904
          %s1913 = scalar_lea.vmem %s327, %s1352 [#allocation11]
          %1914 = vst [vmem:[%s1913] sm:$0xff] %v1905
          %1915 = vst [vmem:[%s1913 + $0x8] sm:$0xff] %v1906
          %1916 = vst [vmem:[%s1913 + $0x10] sm:$0xff] %v1907
          %1917 = vst [vmem:[%s1913 + $0x18] sm:$0xff] %v1908
          %1918 = vst [vmem:[%s1913 + $0x20] sm:$0xff] %v1909
          %1919 = vst [vmem:[%s1913 + $0x28] sm:$0xff] %v1910
          %1920 = vst [vmem:[%s1913 + $0x30] sm:$0xff] %v1911
          %1921 = vst [vmem:[%s1913 + $0x38] sm:$0xff] %v1912
        $region56: #{tpu_custom_call.1} parent=35 // pred_fallthru
          _
        %s1922 = sand.u32 %s159, 1
        %s1923 = scalar_lea.sflag [#allocation7], %s1922
        %s1924 = sand.u32 %s159, 1
        %s1925 = smul.addr %s1924, 72
        %s1926 = scalar_lea.vmem [#allocation11], %s1925
        // Predicated region
        $region57: #{tpu_custom_call.1} parent=35 // pred_check
          %p1927 = pneg %p169
        $region58: #{tpu_custom_call.1} parent=35 // pred_check_branch
          %1929 = sbr.rel (%p1927) target = $region60
        $region59: #{tpu_custom_call.1} parent=35 // pred_region
          %s1931 = ssub.s32 1152, 1152
          %1932 = vsyncadd %s1923, %s1931
          %s1933 = smul.addr %s33, 18
          %s1934 = sadd.s32 %s34, %s1933
          %s1935 = smul.addr %s1934, 128
          %s1936 = scalar_lea.hbm %s5, %s1935
          %s1937 = sshll.u32 %s1926, 4
          %s1938 = int_to_ptr.vmem [resolvable:$true] %s1937
          %1943 = dma.vmem_to_hbm [thread:$0]  %s1938, 1152, %s1936, %s1923, 128, 256, 8
        $region60: #{tpu_custom_call.1} parent=35 // pred_fallthru
          _
      $region36: #{tpu_custom_call.1} parent=5 // pred_fallthru
        _
      %p1944 = scmp.le.s32.totalorder 2, %s24
      // Predicated region
      $region61: #{tpu_custom_call.1} parent=5 // pred_check
        %p1945 = pneg %p1944
      $region62: #{tpu_custom_call.1} parent=5 // pred_check_branch
        %1947 = sbr.rel (%p1945) target = $region64
      $region63: #{tpu_custom_call.1} parent=5 // pred_region
        %s1948 = ssub.s32 %s24, 2
        // Predicated region
        $region65: #{tpu_custom_call.1} parent=63 // pred_check
          %p1949 = pneg %p175
        $region66: #{tpu_custom_call.1} parent=63 // pred_check_branch
          %1951 = sbr.rel (%p1949) target = $region68
        $region67: #{tpu_custom_call.1} parent=63 // pred_region
          %s1952 = sand.u32 %s160, 1
          %s1953 = scalar_lea.sflag [#allocation7], %s1952
          %s1954 = sand.u32 %s160, 1
          %s1955 = smul.addr %s1954, 72
          %s1956 = scalar_lea.vmem [#allocation11], %s1955
          %1957 = dma.done %s1953, 1152
        $region68: #{tpu_custom_call.1} parent=63 // pred_fallthru
          _
      $region64: #{tpu_custom_call.1} parent=5 // pred_fallthru
        _
    $region6: #{tpu_custom_call.1} parent=1 // loop_footer
      %s28 = sadd.s32 1, %s24
    $region7: #{tpu_custom_call.1} parent=1 // loop_footer_branch
      %23 = sbr.rel target = $region3
    $region8: #{tpu_custom_call.1} parent=1 // loop_exit
      _
    %1958 = vsyncpa [#allocation6], 1
    %s1959 = scalar_lea.sflag [#allocation6], 1
    %1960 = vsyncpa %s1959, 1
    %1961 = vsyncpa [#allocation9], 1
    %s1962 = scalar_lea.sflag [#allocation9], 1
    %1963 = vsyncpa %s1962, 1
    %1964 = vsyncpa [#allocation7], 1
    %s1965 = scalar_lea.sflag [#allocation7], 1
    %1966 = vsyncpa %s1965, 1

</llo_original>
